<compile_context>
chip_gen: v7x
topology: tpu7x:2x2x1
jax: 0.10.0
libtpu: 0.0.40
codegen_flags: <defaults>
</compile_context>

<pallas_src>
import math

import jax
import jax.numpy as jnp
from jax.experimental import pallas as pl
from jax.experimental.pallas import tpu as pltpu

LANE = 128  # hidden dims are padded to the TPU lane width (weights only)


def ffnn_kernel(x_ref, w1_ref, w2_ref, w3_ref, b12_ref, b3_ref, o_ref):
    """One batch tile: fc1 -> ReLU -> fc2 -> ReLU -> fc3 -> softmax(dim=1)."""
    x = x_ref[...]                       # (TB, inp)  f32
    b12 = b12_ref[...]                   # (2, 128)   f32 (zero-padded lanes)

    # fc1 + ReLU   (pad lanes: 0-weight cols + 0 bias -> relu(0) = 0)
    h1 = jnp.dot(x, w1_ref[...], preferred_element_type=jnp.float32)
    h1 = jnp.maximum(h1 + b12[0:1, :], 0.0)          # (TB, 128)

    # fc2 + ReLU
    h2 = jnp.dot(h1, w2_ref[...], preferred_element_type=jnp.float32)
    h2 = jnp.maximum(h2 + b12[1:2, :], 0.0)          # (TB, 128)

    # fc3 (w3 stored as (128, out) -> logits already at the real width)
    logits = jnp.dot(h2, w3_ref[...], preferred_element_type=jnp.float32)
    logits = logits + b3_ref[...]                    # (TB, out)

    # numerically stable softmax over the real output axis
    m = jnp.max(logits, axis=1, keepdims=True)
    e = jnp.exp(logits - m)
    denom = jnp.sum(e, axis=1, keepdims=True)
    o_ref[...] = (e / denom).astype(o_ref.dtype)


def _round_up(n, m):
    return ((n + m - 1) // m) * m


def _pad2d(a, rows, cols, dtype):
    out = jnp.zeros((rows, cols), dtype)
    return out.at[: a.shape[0], : a.shape[1]].set(a.astype(dtype))


def ffnn_forward(x, w1, b1, w2, b2, w3, b3, *, block_b=None):
    """x: [B, inp]; weights pre-transposed as [in_features, out_features]."""
    B, inp = x.shape
    hid1 = w1.shape[1]
    hid2 = w2.shape[1]
    out = w3.shape[1]

    if block_b is None:
        # Big tiles amortize per-step overhead; aim for ~2 grid steps so the
        # batch axis can still be sharded across v7x's two TensorCores.
        block_b = max(16, min(4096, _round_up(pl.cdiv(B, 2), 16)))
    block_b = _round_up(min(block_b, _round_up(B, 16)), 16)
    Bp = _round_up(B, block_b)

    # Batch-pad only when needed; feature dim of x stays at its real width.
    xp = x if Bp == B else jnp.zeros((Bp, inp), x.dtype).at[:B].set(x)

    # Weights: hidden dims padded to 128 lanes (zero pad is exact through the
    # ReLUs); w1 keeps its real input width, w3 keeps its real output width.
    w1p = _pad2d(w1, inp, LANE, jnp.float32)     # (inp, 128)
    w2p = _pad2d(w2, LANE, LANE, jnp.float32)    # (128, 128)
    w3p = _pad2d(w3, LANE, out, jnp.float32)     # (128, out)

    # fc1/fc2 biases stacked into one resident buffer; fc3 bias separate.
    b12 = jnp.zeros((2, LANE), jnp.float32)
    b12 = b12.at[0, :hid1].set(b1.reshape(-1).astype(jnp.float32))
    b12 = b12.at[1, :hid2].set(b2.reshape(-1).astype(jnp.float32))
    b3v = b3.reshape(1, out).astype(jnp.float32)

    y = pl.pallas_call(
        ffnn_kernel,
        out_shape=jax.ShapeDtypeStruct((Bp, out), jnp.float32),
        grid_spec=pl.GridSpec(
            grid=(Bp // block_b,),
            in_specs=[
                pl.BlockSpec((block_b, inp), lambda i: (i, 0)),  # x tile
                pl.BlockSpec((inp, LANE), lambda i: (0, 0)),     # w1 resident
                pl.BlockSpec((LANE, LANE), lambda i: (0, 0)),    # w2 resident
                pl.BlockSpec((LANE, out), lambda i: (0, 0)),     # w3 resident
                pl.BlockSpec((2, LANE), lambda i: (0, 0)),       # b1, b2
                pl.BlockSpec((1, out), lambda i: (0, 0)),        # b3
            ],
            out_specs=pl.BlockSpec((block_b, out), lambda i: (i, 0)),
        ),
        compiler_params=pltpu.CompilerParams(
            dimension_semantics=("parallel",)),
    )(xp, w1p, w2p, w3p, b12, b3v)

    return y if Bp == B else y[:B]


def xavier_uniform(key, fan_in, fan_out):
    # matches torch.nn.init.xavier_uniform_ on a (fan_out, fan_in) weight,
    # stored here transposed as (fan_in, fan_out) for the kernel.
    bound = math.sqrt(6.0 / (fan_in + fan_out))
    return jax.random.uniform(key, (fan_in, fan_out), jnp.float32, -bound, bound)


def linear_bias(key, fan_in, fan_out):
    # torch nn.Linear default bias init: U(-1/sqrt(fan_in), 1/sqrt(fan_in))
    bound = 1.0 / math.sqrt(fan_in)
    return jax.random.uniform(key, (1, fan_out), jnp.float32, -bound, bound)


if __name__ == "__main__":
    # FFNN(inp=32, hid1=64, hid2=32, out=8); B=512 exercises a 2-step
    # "parallel" batch grid (block_b = 256).
    inp, hid1, hid2, out = 32, 64, 32, 8
    B = 512

    key = jax.random.PRNGKey(0)
    kx, k1, k2, k3, kb1, kb2, kb3 = jax.random.split(key, 7)

    x = jax.random.normal(kx, (B, inp), jnp.float32)
    w1 = xavier_uniform(k1, inp, hid1)
    b1 = linear_bias(kb1, inp, hid1)
    w2 = xavier_uniform(k2, hid1, hid2)
    b2 = linear_bias(kb2, hid1, hid2)
    w3 = xavier_uniform(k3, hid2, out)
    b3 = linear_bias(kb3, hid2, out)

    y = ffnn_forward(x, w1, b1, w2, b2, w3, b3)
    y = jax.block_until_ready(y)

    # Pure-JAX f32 reference (same math as the PyTorch module's forward).
    h1 = jnp.maximum(
        jnp.dot(x, w1, preferred_element_type=jnp.float32) + b1, 0.0)
    h2 = jnp.maximum(
        jnp.dot(h1, w2, preferred_element_type=jnp.float32) + b2, 0.0)
    logits = jnp.dot(h2, w3, preferred_element_type=jnp.float32) + b3
    ref = jax.nn.softmax(logits, axis=1)

    assert y.shape == (B, out)
    assert jnp.allclose(y, ref, atol=2e-3, rtol=2e-3)
    assert jnp.allclose(jnp.sum(y, axis=1), 1.0, atol=1e-3)

    print("KERNEL_OK")
</pallas_src>

<mosaic_0001>
module attributes {stable_mosaic.version = 11 : i64} {
  func.func @ffnn_kernel(%arg0: i32, %arg1: memref<256x32xf32, #tpu.memory_space<vmem>>, %arg2: memref<32x128xf32, #tpu.memory_space<vmem>>, %arg3: memref<128x128xf32, #tpu.memory_space<vmem>>, %arg4: memref<128x8xf32, #tpu.memory_space<vmem>>, %arg5: memref<2x128xf32, #tpu.memory_space<vmem>>, %arg6: memref<1x8xf32, #tpu.memory_space<vmem>>, %arg7: memref<256x8xf32, #tpu.memory_space<vmem>>) attributes {dimension_semantics = [#tpu.dimension_semantics<parallel>], iteration_bounds = array<i64: 2>, scalar_prefetch = 0 : i64, scratch_operands = 0 : i64, tpu.core_type = #tpu.core_type<tc>, window_params = [{transform_indices = @transform_0, window_bounds = array<i64: 256, 32>}, {pipeline_mode = #tpu.pipeline_mode<synchronous>, transform_indices = @transform_1, window_bounds = array<i64: 32, 128>}, {pipeline_mode = #tpu.pipeline_mode<synchronous>, transform_indices = @transform_2, window_bounds = array<i64: 128, 128>}, {pipeline_mode = #tpu.pipeline_mode<synchronous>, transform_indices = @transform_3, window_bounds = array<i64: 128, 8>}, {pipeline_mode = #tpu.pipeline_mode<synchronous>, transform_indices = @transform_4, window_bounds = array<i64: 2, 128>}, {pipeline_mode = #tpu.pipeline_mode<synchronous>, transform_indices = @transform_5, window_bounds = array<i64: 1, 8>}, {transform_indices = @transform_6, window_bounds = array<i64: 256, 8>}]} {
    %c0 = arith.constant 0 : index
    %c0_0 = arith.constant 0 : index
    %0 = vector.load %arg1[%c0, %c0_0] : memref<256x32xf32, #tpu.memory_space<vmem>>, vector<256x32xf32>
    %c0_1 = arith.constant 0 : index
    %c0_2 = arith.constant 0 : index
    %1 = vector.load %arg5[%c0_1, %c0_2] : memref<2x128xf32, #tpu.memory_space<vmem>>, vector<2x128xf32>
    %c0_3 = arith.constant 0 : index
    %c0_4 = arith.constant 0 : index
    %2 = vector.load %arg2[%c0_3, %c0_4] : memref<32x128xf32, #tpu.memory_space<vmem>>, vector<32x128xf32>
    %cst = arith.constant dense<0.000000e+00> : vector<256x128xf32>
    %3 = tpu.matmul %0, %2, %cst {dimension_numbers = #tpu.dot_dimension_numbers<[1], [0], [0], [1], [0, 0, 1, 1], [], []>} : vector<256x32xf32>, vector<32x128xf32>, vector<256x128xf32> -> vector<256x128xf32>
    %4 = vector.extract_strided_slice %1 {offsets = [0, 0], sizes = [1, 128], strides = [1, 1]} : vector<2x128xf32> to vector<1x128xf32>
    %5 = vector.broadcast %4 : vector<1x128xf32> to vector<256x128xf32>
    %6 = arith.addf %3, %5 : vector<256x128xf32>
    %cst_5 = arith.constant 0.000000e+00 : f32
    %7 = vector.broadcast %cst_5 : f32 to vector<256x128xf32>
    %8 = arith.maximumf %6, %7 : vector<256x128xf32>
    %c0_6 = arith.constant 0 : index
    %c0_7 = arith.constant 0 : index
    %9 = vector.load %arg3[%c0_6, %c0_7] : memref<128x128xf32, #tpu.memory_space<vmem>>, vector<128x128xf32>
    %cst_8 = arith.constant dense<0.000000e+00> : vector<256x128xf32>
    %10 = tpu.matmul %8, %9, %cst_8 {dimension_numbers = #tpu.dot_dimension_numbers<[1], [0], [0], [1], [0, 0, 1, 1], [], []>} : vector<256x128xf32>, vector<128x128xf32>, vector<256x128xf32> -> vector<256x128xf32>
    %11 = vector.extract_strided_slice %1 {offsets = [1, 0], sizes = [1, 128], strides = [1, 1]} : vector<2x128xf32> to vector<1x128xf32>
    %12 = vector.broadcast %11 : vector<1x128xf32> to vector<256x128xf32>
    %13 = arith.addf %10, %12 : vector<256x128xf32>
    %cst_9 = arith.constant 0.000000e+00 : f32
    %14 = vector.broadcast %cst_9 : f32 to vector<256x128xf32>
    %15 = arith.maximumf %13, %14 : vector<256x128xf32>
    %c0_10 = arith.constant 0 : index
    %c0_11 = arith.constant 0 : index
    %16 = vector.load %arg4[%c0_10, %c0_11] : memref<128x8xf32, #tpu.memory_space<vmem>>, vector<128x8xf32>
    %cst_12 = arith.constant dense<0.000000e+00> : vector<256x8xf32>
    %17 = tpu.matmul %15, %16, %cst_12 {dimension_numbers = #tpu.dot_dimension_numbers<[1], [0], [0], [1], [0, 0, 1, 1], [], []>} : vector<256x128xf32>, vector<128x8xf32>, vector<256x8xf32> -> vector<256x8xf32>
    %c0_13 = arith.constant 0 : index
    %c0_14 = arith.constant 0 : index
    %18 = vector.load %arg6[%c0_13, %c0_14] : memref<1x8xf32, #tpu.memory_space<vmem>>, vector<1x8xf32>
    %19 = vector.broadcast %18 : vector<1x8xf32> to vector<256x8xf32>
    %20 = arith.addf %17, %19 : vector<256x8xf32>
    %cst_15 = arith.constant dense<0xFF800000> : vector<256xf32>
    %21 = vector.multi_reduction <maximumf>, %20, %cst_15 [1] : vector<256x8xf32> to vector<256xf32>
    %22 = vector.shape_cast %21 : vector<256xf32> to vector<256x1xf32>
    %23 = vector.broadcast %22 : vector<256x1xf32> to vector<256x8xf32>
    %24 = arith.subf %20, %23 : vector<256x8xf32>
    %25 = math.exp %24 : vector<256x8xf32>
    %cst_16 = arith.constant dense<0.000000e+00> : vector<256xf32>
    %26 = vector.multi_reduction <add>, %25, %cst_16 [1] : vector<256x8xf32> to vector<256xf32>
    %27 = vector.shape_cast %26 : vector<256xf32> to vector<256x1xf32>
    %28 = vector.broadcast %27 : vector<256x1xf32> to vector<256x8xf32>
    %29 = arith.divf %25, %28 : vector<256x8xf32>
    %c0_17 = arith.constant 0 : index
    %c0_18 = arith.constant 0 : index
    %30 = vector.load %arg7[%c0_17, %c0_18] : memref<256x8xf32, #tpu.memory_space<vmem>>, vector<256x8xf32>
    tpu.vector_store %arg7[%c0_17, %c0_18], %29 {strides = array<i32>} : memref<256x8xf32, #tpu.memory_space<vmem>>, vector<256x8xf32>,
    return
  }
  func.func @transform_0(%arg0: i32) -> (i32, i32) {
    %c0_i32 = arith.constant 0 : i32
    %c0_i32_0 = arith.constant 0 : i32
    return %arg0, %c0_i32 : i32, i32
  }
  func.func @transform_1(%arg0: i32) -> (i32, i32) {
    %c0_i32 = arith.constant 0 : i32
    %c0_i32_0 = arith.constant 0 : i32
    %c0_i32_1 = arith.constant 0 : i32
    return %c0_i32, %c0_i32_0 : i32, i32
  }
  func.func @transform_2(%arg0: i32) -> (i32, i32) {
    %c0_i32 = arith.constant 0 : i32
    %c0_i32_0 = arith.constant 0 : i32
    %c0_i32_1 = arith.constant 0 : i32
    return %c0_i32, %c0_i32_0 : i32, i32
  }
  func.func @transform_3(%arg0: i32) -> (i32, i32) {
    %c0_i32 = arith.constant 0 : i32
    %c0_i32_0 = arith.constant 0 : i32
    %c0_i32_1 = arith.constant 0 : i32
    return %c0_i32, %c0_i32_0 : i32, i32
  }
  func.func @transform_4(%arg0: i32) -> (i32, i32) {
    %c0_i32 = arith.constant 0 : i32
    %c0_i32_0 = arith.constant 0 : i32
    %c0_i32_1 = arith.constant 0 : i32
    return %c0_i32, %c0_i32_0 : i32, i32
  }
  func.func @transform_5(%arg0: i32) -> (i32, i32) {
    %c0_i32 = arith.constant 0 : i32
    %c0_i32_0 = arith.constant 0 : i32
    %c0_i32_1 = arith.constant 0 : i32
    return %c0_i32, %c0_i32_0 : i32, i32
  }
  func.func @transform_6(%arg0: i32) -> (i32, i32) {
    %c0_i32 = arith.constant 0 : i32
    %c0_i32_0 = arith.constant 0 : i32
    return %arg0, %c0_i32 : i32, i32
  }
}

</mosaic_0001>

<llo_original>
// kernel: tpu_custom_call.1
$region0: #{tpu_custom_call.1}
  #allocation0 [shape = 'u32[]', space=smem, size = 0x4, offset = 0x4, fixed_abs, tag = 'smem constant byte address 0x4 - core index']
  #allocation1 [shape = 'u32[144,128]{1,0:T(1,128)}', space=vmem, size = 0x12000, scoped, tag = 'internal scratch']
  %s0 = inlined_call_operand.vmem [shape: f32[512,32], index: 0, kind: input, shape index: {}]
  %s1 = inlined_call_operand.vmem [shape: f32[32,128], index: 1, kind: input, shape index: {}]
  %s2 = inlined_call_operand.vmem [shape: f32[128,128], index: 2, kind: input, shape index: {}]
  %s3 = inlined_call_operand.vmem [shape: f32[128,8], index: 3, kind: input, shape index: {}]
  %s4 = inlined_call_operand.vmem [shape: f32[2,128], index: 4, kind: input, shape index: {}]
  %s5 = inlined_call_operand.vmem [shape: f32[1,8], index: 5, kind: input, shape index: {}]
  %s6 = inlined_call_operand.vmem [shape: f32[512,8], index: 6, kind: output, shape index: {}]
  %s7 = sld [smem:[#allocation0]]
  $region57: #{tpu_custom_call.1} parent=0
    _
  %s9 = ssub.s32 1, %s7
  %s10 = scalar_select 0, %s9, %s7
  loop: start=0, step=1, limit=4
  $region2: #{tpu_custom_call.1} parent=0 // loop_pre_header
    _
  $region3: #{tpu_custom_call.1} parent=0 // loop_header
    %s12 = sphi 0, %s16
    %p13 = scmp.ge.s32.totalorder %s12, 4
    %s22 = sphi 0, %s24
    %s25 = sphi 0, %s22
    %s26 = sphi 0, %s25
    %s42 = sphi 0, %s26
    %s46 = sphi 0, %s46
    %s48 = sphi 0, %s46
    %s49 = sphi 0, %s48
    %s63 = sphi 0, %s49
    %s67 = sphi 0, %s67
    %s69 = sphi 0, %s67
    %s70 = sphi 0, %s69
    %s84 = sphi 0, %s70
    %s88 = sphi 0, %s88
    %s90 = sphi 0, %s88
    %s91 = sphi 0, %s90
    %s105 = sphi 0, %s91
    %s109 = sphi 0, %s109
    %s111 = sphi 0, %s109
    %s112 = sphi 0, %s111
    %s126 = sphi 0, %s112
    %s130 = sphi 0, %s130
    %s132 = sphi 0, %s130
    %s133 = sphi 0, %s132
    %s147 = sphi 0, %s133
    %s153 = sphi 0, %s155
    %s156 = sphi 0, %s153
    %s157 = sphi 0, %s156
    %s173 = sphi 0, %s157
  $region4: #{tpu_custom_call.1} parent=0 // loop_header_branch
    %15 = sbr.rel (%p13) target = $region8
  $region5: #{tpu_custom_call.1} parent=0 // loop_body
    %s17 = ssub.s32 %s12, 1
    %s18 = ssub.s32 %s12, 2
    %s19 = sadd.s32 %s12, 1
    %s20 = ssub.s32 %s12, %s19
    %p21 = scmp.eq.s32.totalorder %s20, 0
    %s23 = sadd.s32 %s22, 1
    %s24 = scalar_select %p21, %s22, %s23
    %p27 = pneg %p21
    %p28 = scmp.eq.s32.totalorder %s12, 1
    %p29 = por %p27, %p28
    %p30 = scmp.ne.s32.totalorder %s22, %s25
    %p31 = scmp.eq.s32.totalorder %s12, 0
    %p32 = por %p30, %p31
    %p33 = scmp.ne.s32.totalorder %s22, %s25
    %p34 = scmp.eq.s32.totalorder %s17, 1
    %p35 = por %p33, %p34
    %p36 = scmp.ne.s32.totalorder %s25, %s26
    %p37 = scmp.eq.s32.totalorder %s17, 0
    %p38 = por %p36, %p37
    %p39 = scmp.ne.s32.totalorder %s25, %s26
    %p40 = scmp.eq.s32.totalorder %s18, 1
    %p41 = por %p39, %p40
    %p43 = scmp.ne.s32.totalorder %s26, %s42
    %p44 = scmp.eq.s32.totalorder %s18, 0
    %p45 = por %p43, %p44
    %s47 = sadd.s32 %s46, 1
    %p50 = scmp.eq.s32.totalorder %s12, 1
    %p51 = scmp.ne.s32.totalorder %s46, %s48
    %p52 = scmp.eq.s32.totalorder %s12, 0
    %p53 = por %p51, %p52
    %p54 = scmp.ne.s32.totalorder %s46, %s48
    %p55 = scmp.eq.s32.totalorder %s17, 1
    %p56 = por %p54, %p55
    %p57 = scmp.ne.s32.totalorder %s48, %s49
    %p58 = scmp.eq.s32.totalorder %s17, 0
    %p59 = por %p57, %p58
    %p60 = scmp.ne.s32.totalorder %s48, %s49
    %p61 = scmp.eq.s32.totalorder %s18, 1
    %p62 = por %p60, %p61
    %p64 = scmp.ne.s32.totalorder %s49, %s63
    %p65 = scmp.eq.s32.totalorder %s18, 0
    %p66 = por %p64, %p65
    %s68 = sadd.s32 %s67, 1
    %p71 = scmp.eq.s32.totalorder %s12, 1
    %p72 = scmp.ne.s32.totalorder %s67, %s69
    %p73 = scmp.eq.s32.totalorder %s12, 0
    %p74 = por %p72, %p73
    %p75 = scmp.ne.s32.totalorder %s67, %s69
    %p76 = scmp.eq.s32.totalorder %s17, 1
    %p77 = por %p75, %p76
    %p78 = scmp.ne.s32.totalorder %s69, %s70
    %p79 = scmp.eq.s32.totalorder %s17, 0
    %p80 = por %p78, %p79
    %p81 = scmp.ne.s32.totalorder %s69, %s70
    %p82 = scmp.eq.s32.totalorder %s18, 1
    %p83 = por %p81, %p82
    %p85 = scmp.ne.s32.totalorder %s70, %s84
    %p86 = scmp.eq.s32.totalorder %s18, 0
    %p87 = por %p85, %p86
    %s89 = sadd.s32 %s88, 1
    %p92 = scmp.eq.s32.totalorder %s12, 1
    %p93 = scmp.ne.s32.totalorder %s88, %s90
    %p94 = scmp.eq.s32.totalorder %s12, 0
    %p95 = por %p93, %p94
    %p96 = scmp.ne.s32.totalorder %s88, %s90
    %p97 = scmp.eq.s32.totalorder %s17, 1
    %p98 = por %p96, %p97
    %p99 = scmp.ne.s32.totalorder %s90, %s91
    %p100 = scmp.eq.s32.totalorder %s17, 0
    %p101 = por %p99, %p100
    %p102 = scmp.ne.s32.totalorder %s90, %s91
    %p103 = scmp.eq.s32.totalorder %s18, 1
    %p104 = por %p102, %p103
    %p106 = scmp.ne.s32.totalorder %s91, %s105
    %p107 = scmp.eq.s32.totalorder %s18, 0
    %p108 = por %p106, %p107
    %s110 = sadd.s32 %s109, 1
    %p113 = scmp.eq.s32.totalorder %s12, 1
    %p114 = scmp.ne.s32.totalorder %s109, %s111
    %p115 = scmp.eq.s32.totalorder %s12, 0
    %p116 = por %p114, %p115
    %p117 = scmp.ne.s32.totalorder %s109, %s111
    %p118 = scmp.eq.s32.totalorder %s17, 1
    %p119 = por %p117, %p118
    %p120 = scmp.ne.s32.totalorder %s111, %s112
    %p121 = scmp.eq.s32.totalorder %s17, 0
    %p122 = por %p120, %p121
    %p123 = scmp.ne.s32.totalorder %s111, %s112
    %p124 = scmp.eq.s32.totalorder %s18, 1
    %p125 = por %p123, %p124
    %p127 = scmp.ne.s32.totalorder %s112, %s126
    %p128 = scmp.eq.s32.totalorder %s18, 0
    %p129 = por %p127, %p128
    %s131 = sadd.s32 %s130, 1
    %p134 = scmp.eq.s32.totalorder %s12, 1
    %p135 = scmp.ne.s32.totalorder %s130, %s132
    %p136 = scmp.eq.s32.totalorder %s12, 0
    %p137 = por %p135, %p136
    %p138 = scmp.ne.s32.totalorder %s130, %s132
    %p139 = scmp.eq.s32.totalorder %s17, 1
    %p140 = por %p138, %p139
    %p141 = scmp.ne.s32.totalorder %s132, %s133
    %p142 = scmp.eq.s32.totalorder %s17, 0
    %p143 = por %p141, %p142
    %p144 = scmp.ne.s32.totalorder %s132, %s133
    %p145 = scmp.eq.s32.totalorder %s18, 1
    %p146 = por %p144, %p145
    %p148 = scmp.ne.s32.totalorder %s133, %s147
    %p149 = scmp.eq.s32.totalorder %s18, 0
    %p150 = por %p148, %p149
    %s151 = ssub.s32 %s12, %s19
    %p152 = scmp.eq.s32.totalorder %s151, 0
    %s154 = sadd.s32 %s153, 1
    %s155 = scalar_select %p152, %s153, %s154
    %p158 = pneg %p152
    %p159 = scmp.eq.s32.totalorder %s12, 1
    %p160 = por %p158, %p159
    %p161 = scmp.ne.s32.totalorder %s153, %s156
    %p162 = scmp.eq.s32.totalorder %s12, 0
    %p163 = por %p161, %p162
    %p164 = scmp.ne.s32.totalorder %s153, %s156
    %p165 = scmp.eq.s32.totalorder %s17, 1
    %p166 = por %p164, %p165
    %p167 = scmp.ne.s32.totalorder %s156, %s157
    %p168 = scmp.eq.s32.totalorder %s17, 0
    %p169 = por %p167, %p168
    %p170 = scmp.ne.s32.totalorder %s156, %s157
    %p171 = scmp.eq.s32.totalorder %s18, 1
    %p172 = por %p170, %p171
    %p174 = scmp.ne.s32.totalorder %s157, %s173
    %p175 = scmp.eq.s32.totalorder %s18, 0
    %p176 = por %p174, %p175
    %p177 = scmp.le.s32.totalorder 1, %s12
    %p178 = scmp.lt.s32.totalorder %s12, 3
    %p179 = pnand %p177, %p178
    %p180 = pneg %p179
    // Predicated region
    $region9: #{tpu_custom_call.1} parent=5 // pred_check
      _
    $region10: #{tpu_custom_call.1} parent=5 // pred_check_branch
      %182 = sbr.rel (%p179) target = $region12
    $region11: #{tpu_custom_call.1} parent=5 // pred_region
      %s183 = ssub.s32 %s12, 1
      // Predicated region
      $region13: #{tpu_custom_call.1} parent=11 // pred_check
        %p184 = pneg %p59
      $region14: #{tpu_custom_call.1} parent=11 // pred_check_branch
        %186 = sbr.rel (%p184) target = $region16
      $region15: #{tpu_custom_call.1} parent=11 // pred_region
        _
      $region16: #{tpu_custom_call.1} parent=11 // pred_fallthru
        _
      // Predicated region
      $region17: #{tpu_custom_call.1} parent=11 // pred_check
        %p187 = pneg %p80
      $region18: #{tpu_custom_call.1} parent=11 // pred_check_branch
        %189 = sbr.rel (%p187) target = $region20
      $region19: #{tpu_custom_call.1} parent=11 // pred_region
        _
      $region20: #{tpu_custom_call.1} parent=11 // pred_fallthru
        _
      // Predicated region
      $region21: #{tpu_custom_call.1} parent=11 // pred_check
        %p190 = pneg %p101
      $region22: #{tpu_custom_call.1} parent=11 // pred_check_branch
        %192 = sbr.rel (%p190) target = $region24
      $region23: #{tpu_custom_call.1} parent=11 // pred_region
        _
      $region24: #{tpu_custom_call.1} parent=11 // pred_fallthru
        _
      // Predicated region
      $region25: #{tpu_custom_call.1} parent=11 // pred_check
        %p193 = pneg %p122
      $region26: #{tpu_custom_call.1} parent=11 // pred_check_branch
        %195 = sbr.rel (%p193) target = $region28
      $region27: #{tpu_custom_call.1} parent=11 // pred_region
        _
      $region28: #{tpu_custom_call.1} parent=11 // pred_fallthru
        _
      // Predicated region
      $region29: #{tpu_custom_call.1} parent=11 // pred_check
        %p196 = pneg %p143
      $region30: #{tpu_custom_call.1} parent=11 // pred_check_branch
        %198 = sbr.rel (%p196) target = $region32
      $region31: #{tpu_custom_call.1} parent=11 // pred_region
        _
      $region32: #{tpu_custom_call.1} parent=11 // pred_fallthru
        _
    $region12: #{tpu_custom_call.1} parent=5 // pred_fallthru
      _
    %p199 = scmp.lt.s32.totalorder %s12, 2
    // Predicated region
    $region33: #{tpu_custom_call.1} parent=5 // pred_check
      %p200 = pneg %p199
    $region34: #{tpu_custom_call.1} parent=5 // pred_check_branch
      %202 = sbr.rel (%p200) target = $region36
    $region35: #{tpu_custom_call.1} parent=5 // pred_region
      // Predicated region
      $region37: #{tpu_custom_call.1} parent=35 // pred_check
        %p203 = pneg %p32
      $region38: #{tpu_custom_call.1} parent=35 // pred_check_branch
        %205 = sbr.rel (%p203) target = $region40
      $region39: #{tpu_custom_call.1} parent=35 // pred_region
        %s206 = smul.u32 32, %s12
        %p207 = scmp.lt.s32.totalorder %s206, 63
        %s208 = scalar_select %p207, %s206, 63
        %s209 = smul.addr %s208, 8
        %s210 = scalar_lea.vmem %s0, %s209
        %s211 = smul.u32 32, %s12
      $region40: #{tpu_custom_call.1} parent=35 // pred_fallthru
        _
    $region36: #{tpu_custom_call.1} parent=5 // pred_fallthru
      _
    %p212 = scmp.le.s32.totalorder 1, %s12
    %p213 = scmp.lt.s32.totalorder %s12, 3
    %p214 = pnand %p212, %p213
    %p215 = pneg %p214
    // Predicated region
    $region41: #{tpu_custom_call.1} parent=5 // pred_check
      _
    $region42: #{tpu_custom_call.1} parent=5 // pred_check_branch
      %217 = sbr.rel (%p214) target = $region44
    $region43: #{tpu_custom_call.1} parent=5 // pred_region
      %s218 = ssub.s32 %s12, 1
      %s219 = smul.u32 32, %s17
      %p220 = scmp.lt.s32.totalorder %s219, 63
      %s221 = scalar_select %p220, %s219, 63
      %s222 = smul.addr %s221, 8
      %s223 = scalar_lea.vmem %s0, %s222
      %p224 = pneg %p38
      %p225 = pneg %p35
      %p226 = pneg %p59
      %p227 = pneg %p56
      %p228 = pneg %p80
      %p229 = pneg %p77
      %p230 = pneg %p101
      %p231 = pneg %p98
      %p232 = pneg %p122
      %p233 = pneg %p119
      %p234 = pneg %p143
      %p235 = pneg %p140
      %p236 = pneg %p169
      %p237 = pneg %p166
      %s238 = smul.u32 32, %s17
      %p239 = scmp.lt.s32.totalorder %s238, 63
      %s240 = scalar_select %p239, %s238, 63
      %s241 = smul.addr %s240, 8
      %s242 = scalar_lea.vmem %s6, %s241
      %s243 = smul.u32 32, %s17
      %p244 = scmp.lt.s32.totalorder %s243, 63
      %s245 = scalar_select %p244, %s243, 63
      %s246 = smul.addr %s245, 8
      %s247 = scalar_lea.vmem %s0, %s246
      %s248 = smul.u32 32, %s17
      %s249 = smul.u32 32, %s17
      %p250 = scmp.lt.s32.totalorder %s249, 63
      %s251 = scalar_select %p250, %s249, 63
      %s252 = smul.addr %s251, 8
      %s253 = scalar_lea.vmem %s6, %s252
      %s254 = smul.u32 32, %s17
      %v255 = vld [vmem:[%s247] sm:$0xff]
      %v256 = vld [vmem:[%s247 + $0x8] sm:$0xff]
      %v257 = vld [vmem:[%s247 + $0x10] sm:$0xff]
      %v258 = vld [vmem:[%s247 + $0x18] sm:$0xff]
      %v259 = vld [vmem:[%s247 + $0x20] sm:$0xff]
      %v260 = vld [vmem:[%s247 + $0x28] sm:$0xff]
      %v261 = vld [vmem:[%s247 + $0x30] sm:$0xff]
      %v262 = vld [vmem:[%s247 + $0x38] sm:$0xff]
      %v263 = vld [vmem:[%s247 + $0x40] sm:$0xff]
      %v264 = vld [vmem:[%s247 + $0x48] sm:$0xff]
      %v265 = vld [vmem:[%s247 + $0x50] sm:$0xff]
      %v266 = vld [vmem:[%s247 + $0x58] sm:$0xff]
      %v267 = vld [vmem:[%s247 + $0x60] sm:$0xff]
      %v268 = vld [vmem:[%s247 + $0x68] sm:$0xff]
      %v269 = vld [vmem:[%s247 + $0x70] sm:$0xff]
      %v270 = vld [vmem:[%s247 + $0x78] sm:$0xff]
      %v271 = vld [vmem:[%s247 + $0x80] sm:$0xff]
      %v272 = vld [vmem:[%s247 + $0x88] sm:$0xff]
      %v273 = vld [vmem:[%s247 + $0x90] sm:$0xff]
      %v274 = vld [vmem:[%s247 + $0x98] sm:$0xff]
      %v275 = vld [vmem:[%s247 + $0xa0] sm:$0xff]
      %v276 = vld [vmem:[%s247 + $0xa8] sm:$0xff]
      %v277 = vld [vmem:[%s247 + $0xb0] sm:$0xff]
      %v278 = vld [vmem:[%s247 + $0xb8] sm:$0xff]
      %v279 = vld [vmem:[%s247 + $0xc0] sm:$0xff]
      %v280 = vld [vmem:[%s247 + $0xc8] sm:$0xff]
      %v281 = vld [vmem:[%s247 + $0xd0] sm:$0xff]
      %v282 = vld [vmem:[%s247 + $0xd8] sm:$0xff]
      %v283 = vld [vmem:[%s247 + $0xe0] sm:$0xff]
      %v284 = vld [vmem:[%s247 + $0xe8] sm:$0xff]
      %v285 = vld [vmem:[%s247 + $0xf0] sm:$0xff]
      %v286 = vld [vmem:[%s247 + $0xf8] sm:$0xff]
      %v287 = vld [vmem:[%s4] sm:$0x3]
      %v288 = vld [vmem:[%s1] sm:$0xff]
      %v289 = vld [vmem:[%s1 + $0x8] sm:$0xff]
      %v290 = vld [vmem:[%s1 + $0x10] sm:$0xff]
      %v291 = vld [vmem:[%s1 + $0x18] sm:$0xff]
      %v292 = vlaneseq
      %v293 = vshrl.u32 %v292, 7
      %v294 = vsub.s32 0, %v293
      %v295 = vrot.slane %v287, %v294
      %vm296 = vcmask 261120
      %v298 = vsel %vm296, %v255, 0
      %v301 = vsel %vm296, %v256, 0
      %v304 = vsel %vm296, %v257, 0
      %v307 = vsel %vm296, %v258, 0
      %v310 = vsel %vm296, %v259, 0
      %v313 = vsel %vm296, %v260, 0
      %v316 = vsel %vm296, %v261, 0
      %v319 = vsel %vm296, %v262, 0
      %v322 = vsel %vm296, %v263, 0
      %v325 = vsel %vm296, %v264, 0
      %v328 = vsel %vm296, %v265, 0
      %v331 = vsel %vm296, %v266, 0
      %v334 = vsel %vm296, %v267, 0
      %v337 = vsel %vm296, %v268, 0
      %v340 = vsel %vm296, %v269, 0
      %v343 = vsel %vm296, %v270, 0
      %v346 = vsel %vm296, %v271, 0
      %v349 = vsel %vm296, %v272, 0
      %v352 = vsel %vm296, %v273, 0
      %v355 = vsel %vm296, %v274, 0
      %v358 = vsel %vm296, %v275, 0
      %v361 = vsel %vm296, %v276, 0
      %v364 = vsel %vm296, %v277, 0
      %v367 = vsel %vm296, %v278, 0
      %v370 = vsel %vm296, %v279, 0
      %v373 = vsel %vm296, %v280, 0
      %v376 = vsel %vm296, %v281, 0
      %v379 = vsel %vm296, %v282, 0
      %v382 = vsel %vm296, %v283, 0
      %v385 = vsel %vm296, %v284, 0
      %v388 = vsel %vm296, %v285, 0
      %v391 = vsel %vm296, %v286, 0
      %393 = vmatprep.subr.mxu0 0.0
      %394 = vmatpush1.msra.mxu0 %v288
      %395 = vmatprep.subr.mxu0 0.0
      %396 = vmatpush1.msra.mxu0 %v289
      %397 = vmatprep.subr.mxu0 0.0
      %398 = vmatpush1.msra.mxu0 %v290
      %399 = vmatprep.subr.mxu0 0.0
      %400 = vmatpush1.msra.mxu0 %v291
      %401 = vmatprep.subr.mxu0 0.0
      %402 = vmatpush1.msra.mxu0 0.0
      %403 = vmatprep.subr.mxu0 0.0
      %404 = vmatpush1.msra.mxu0 0.0
      %405 = vmatprep.subr.mxu0 0.0
      %406 = vmatpush1.msra.mxu0 0.0
      %407 = vmatprep.subr.mxu0 0.0
      %408 = vmatpush1.msra.mxu0 0.0
      %409 = vmatprep.subr.mxu0 0.0
      %410 = vmatpush1.msra.mxu0 0.0
      %411 = vmatprep.subr.mxu0 0.0
      %412 = vmatpush1.msra.mxu0 0.0
      %413 = vmatprep.subr.mxu0 0.0
      %414 = vmatpush1.msra.mxu0 0.0
      %415 = vmatprep.subr.mxu0 0.0
      %416 = vmatpush1.msra.mxu0 0.0
      %417 = vmatprep.subr.mxu0 0.0
      %418 = vmatpush1.msra.mxu0 0.0
      %419 = vmatprep.subr.mxu0 0.0
      %420 = vmatpush1.msra.mxu0 0.0
      %421 = vmatprep.subr.mxu0 0.0
      %422 = vmatpush1.msra.mxu0 0.0
      %423 = vmatprep.subr.mxu0 0.0
      %424 = vmatpush1.msra.mxu0 0.0
      %425 = vmatprep.subr.mxu0 0.0
      %426 = vmatpush1.msra.mxu0 0.0
      %427 = vmatprep.subr.mxu0 0.0
      %428 = vmatpush1.msra.mxu0 0.0
      %429 = vmatprep.subr.mxu0 0.0
      %430 = vmatpush1.msra.mxu0 0.0
      %431 = vmatprep.subr.mxu0 0.0
      %432 = vmatpush1.msra.mxu0 0.0
      %433 = vmatprep.subr.mxu0 0.0
      %434 = vmatpush1.msra.mxu0 0.0
      %435 = vmatprep.subr.mxu0 0.0
      %436 = vmatpush1.msra.mxu0 0.0
      %437 = vmatprep.subr.mxu0 0.0
      %438 = vmatpush1.msra.mxu0 0.0
      %439 = vmatprep.subr.mxu0 0.0
      %440 = vmatpush1.msra.mxu0 0.0
      %441 = vmatprep.subr.mxu0 0.0
      %442 = vmatpush1.msra.mxu0 0.0
      %443 = vmatprep.subr.mxu0 0.0
      %444 = vmatpush1.msra.mxu0 0.0
      %445 = vmatprep.subr.mxu0 0.0
      %446 = vmatpush1.msra.mxu0 0.0
      %447 = vmatprep.subr.mxu0 0.0
      %448 = vmatpush1.msra.mxu0 0.0
      %449 = vmatprep.subr.mxu0 0.0
      %450 = vmatpush1.msra.mxu0 0.0
      %451 = vmatprep.subr.mxu0 0.0
      %452 = vmatpush1.msra.mxu0 0.0
      %453 = vmatprep.subr.mxu0 0.0
      %454 = vmatpush1.msra.mxu0 0.0
      %455 = vmatprep.subr.mxu0 0.0
      %456 = vmatpush1.msra.mxu0 0.0
      %457 = vmatprep.mubr.f32.mxu0 0.0
      %458 = vmatmul.mubr.f32.gmra.mrb[0].mxu0 %v298
      %v459 = vpop.f32.mrb[0].mxu0
      %v460 = vadd.f32 %v295, %v459
      %v461 = vpop.f32.mrb[0].mxu0
      %462 = vmatprep.mubr.f32.mxu0 0.0
      %463 = vmatmul.mubr.f32.gmra.mrb[0].mxu0 %v301
      %v464 = vpop.f32.mrb[0].mxu0
      %v465 = vadd.f32 %v295, %v464
      %v466 = vpop.f32.mrb[0].mxu0
      %467 = vmatprep.mubr.f32.mxu0 0.0
      %468 = vmatmul.mubr.f32.gmra.mrb[0].mxu0 %v304
      %v469 = vpop.f32.mrb[0].mxu0
      %v470 = vadd.f32 %v295, %v469
      %v471 = vpop.f32.mrb[0].mxu0
      %472 = vmatprep.mubr.f32.mxu0 0.0
      %473 = vmatmul.mubr.f32.gmra.mrb[0].mxu0 %v307
      %v474 = vpop.f32.mrb[0].mxu0
      %v475 = vadd.f32 %v295, %v474
      %v476 = vpop.f32.mrb[0].mxu0
      %477 = vmatprep.mubr.f32.mxu0 0.0
      %478 = vmatmul.mubr.f32.gmra.mrb[0].mxu0 %v310
      %v479 = vpop.f32.mrb[0].mxu0
      %v480 = vadd.f32 %v295, %v479
      %v481 = vpop.f32.mrb[0].mxu0
      %482 = vmatprep.mubr.f32.mxu0 0.0
      %483 = vmatmul.mubr.f32.gmra.mrb[0].mxu0 %v313
      %v484 = vpop.f32.mrb[0].mxu0
      %v485 = vadd.f32 %v295, %v484
      %v486 = vpop.f32.mrb[0].mxu0
      %487 = vmatprep.mubr.f32.mxu0 0.0
      %488 = vmatmul.mubr.f32.gmra.mrb[0].mxu0 %v316
      %v489 = vpop.f32.mrb[0].mxu0
      %v490 = vadd.f32 %v295, %v489
      %v491 = vpop.f32.mrb[0].mxu0
      %492 = vmatprep.mubr.f32.mxu0 0.0
      %493 = vmatmul.mubr.f32.gmra.mrb[0].mxu0 %v319
      %v494 = vpop.f32.mrb[0].mxu0
      %v495 = vadd.f32 %v295, %v494
      %v496 = vpop.f32.mrb[0].mxu0
      %497 = vmatprep.mubr.f32.mxu0 0.0
      %498 = vmatmul.mubr.f32.gmra.mrb[0].mxu0 %v322
      %v499 = vpop.f32.mrb[0].mxu0
      %v500 = vadd.f32 %v295, %v499
      %v501 = vpop.f32.mrb[0].mxu0
      %502 = vmatprep.mubr.f32.mxu0 0.0
      %503 = vmatmul.mubr.f32.gmra.mrb[0].mxu0 %v325
      %v504 = vpop.f32.mrb[0].mxu0
      %v505 = vadd.f32 %v295, %v504
      %v506 = vpop.f32.mrb[0].mxu0
      %507 = vmatprep.mubr.f32.mxu0 0.0
      %508 = vmatmul.mubr.f32.gmra.mrb[0].mxu0 %v328
      %v509 = vpop.f32.mrb[0].mxu0
      %v510 = vadd.f32 %v295, %v509
      %v511 = vpop.f32.mrb[0].mxu0
      %512 = vmatprep.mubr.f32.mxu0 0.0
      %513 = vmatmul.mubr.f32.gmra.mrb[0].mxu0 %v331
      %v514 = vpop.f32.mrb[0].mxu0
      %v515 = vadd.f32 %v295, %v514
      %v516 = vpop.f32.mrb[0].mxu0
      %517 = vmatprep.mubr.f32.mxu0 0.0
      %518 = vmatmul.mubr.f32.gmra.mrb[0].mxu0 %v334
      %v519 = vpop.f32.mrb[0].mxu0
      %v520 = vadd.f32 %v295, %v519
      %v521 = vpop.f32.mrb[0].mxu0
      %522 = vmatprep.mubr.f32.mxu0 0.0
      %523 = vmatmul.mubr.f32.gmra.mrb[0].mxu0 %v337
      %v524 = vpop.f32.mrb[0].mxu0
      %v525 = vadd.f32 %v295, %v524
      %v526 = vpop.f32.mrb[0].mxu0
      %527 = vmatprep.mubr.f32.mxu0 0.0
      %528 = vmatmul.mubr.f32.gmra.mrb[0].mxu0 %v340
      %v529 = vpop.f32.mrb[0].mxu0
      %v530 = vadd.f32 %v295, %v529
      %v531 = vpop.f32.mrb[0].mxu0
      %532 = vmatprep.mubr.f32.mxu0 0.0
      %533 = vmatmul.mubr.f32.gmra.mrb[0].mxu0 %v343
      %v534 = vpop.f32.mrb[0].mxu0
      %v535 = vadd.f32 %v295, %v534
      %v536 = vpop.f32.mrb[0].mxu0
      %537 = vmatprep.mubr.f32.mxu0 0.0
      %538 = vmatmul.mubr.f32.gmra.mrb[0].mxu0 %v346
      %v539 = vpop.f32.mrb[0].mxu0
      %v540 = vadd.f32 %v295, %v539
      %v541 = vpop.f32.mrb[0].mxu0
      %542 = vmatprep.mubr.f32.mxu0 0.0
      %543 = vmatmul.mubr.f32.gmra.mrb[0].mxu0 %v349
      %v544 = vpop.f32.mrb[0].mxu0
      %v545 = vadd.f32 %v295, %v544
      %v546 = vpop.f32.mrb[0].mxu0
      %547 = vmatprep.mubr.f32.mxu0 0.0
      %548 = vmatmul.mubr.f32.gmra.mrb[0].mxu0 %v352
      %v549 = vpop.f32.mrb[0].mxu0
      %v550 = vadd.f32 %v295, %v549
      %v551 = vpop.f32.mrb[0].mxu0
      %552 = vmatprep.mubr.f32.mxu0 0.0
      %553 = vmatmul.mubr.f32.gmra.mrb[0].mxu0 %v355
      %v554 = vpop.f32.mrb[0].mxu0
      %v555 = vadd.f32 %v295, %v554
      %v556 = vpop.f32.mrb[0].mxu0
      %557 = vmatprep.mubr.f32.mxu0 0.0
      %558 = vmatmul.mubr.f32.gmra.mrb[0].mxu0 %v358
      %v559 = vpop.f32.mrb[0].mxu0
      %v560 = vadd.f32 %v295, %v559
      %v561 = vpop.f32.mrb[0].mxu0
      %562 = vmatprep.mubr.f32.mxu0 0.0
      %563 = vmatmul.mubr.f32.gmra.mrb[0].mxu0 %v361
      %v564 = vpop.f32.mrb[0].mxu0
      %v565 = vadd.f32 %v295, %v564
      %v566 = vpop.f32.mrb[0].mxu0
      %567 = vmatprep.mubr.f32.mxu0 0.0
      %568 = vmatmul.mubr.f32.gmra.mrb[0].mxu0 %v364
      %v569 = vpop.f32.mrb[0].mxu0
      %v570 = vadd.f32 %v295, %v569
      %v571 = vpop.f32.mrb[0].mxu0
      %572 = vmatprep.mubr.f32.mxu0 0.0
      %573 = vmatmul.mubr.f32.gmra.mrb[0].mxu0 %v367
      %v574 = vpop.f32.mrb[0].mxu0
      %v575 = vadd.f32 %v295, %v574
      %v576 = vpop.f32.mrb[0].mxu0
      %577 = vmatprep.mubr.f32.mxu0 0.0
      %578 = vmatmul.mubr.f32.gmra.mrb[0].mxu0 %v370
      %v579 = vpop.f32.mrb[0].mxu0
      %v580 = vadd.f32 %v295, %v579
      %v581 = vpop.f32.mrb[0].mxu0
      %582 = vmatprep.mubr.f32.mxu0 0.0
      %583 = vmatmul.mubr.f32.gmra.mrb[0].mxu0 %v373
      %v584 = vpop.f32.mrb[0].mxu0
      %v585 = vadd.f32 %v295, %v584
      %v586 = vpop.f32.mrb[0].mxu0
      %587 = vmatprep.mubr.f32.mxu0 0.0
      %588 = vmatmul.mubr.f32.gmra.mrb[0].mxu0 %v376
      %v589 = vpop.f32.mrb[0].mxu0
      %v590 = vadd.f32 %v295, %v589
      %v591 = vpop.f32.mrb[0].mxu0
      %592 = vmatprep.mubr.f32.mxu0 0.0
      %593 = vmatmul.mubr.f32.gmra.mrb[0].mxu0 %v379
      %v594 = vpop.f32.mrb[0].mxu0
      %v595 = vadd.f32 %v295, %v594
      %v596 = vpop.f32.mrb[0].mxu0
      %597 = vmatprep.mubr.f32.mxu0 0.0
      %598 = vmatmul.mubr.f32.gmra.mrb[0].mxu0 %v382
      %v599 = vpop.f32.mrb[0].mxu0
      %v600 = vadd.f32 %v295, %v599
      %v601 = vpop.f32.mrb[0].mxu0
      %602 = vmatprep.mubr.f32.mxu0 0.0
      %603 = vmatmul.mubr.f32.gmra.mrb[0].mxu0 %v385
      %v604 = vpop.f32.mrb[0].mxu0
      %v605 = vadd.f32 %v295, %v604
      %v606 = vpop.f32.mrb[0].mxu0
      %607 = vmatprep.mubr.f32.mxu0 0.0
      %608 = vmatmul.mubr.f32.gmra.mrb[0].mxu0 %v388
      %v609 = vpop.f32.mrb[0].mxu0
      %v610 = vadd.f32 %v295, %v609
      %v611 = vpop.f32.mrb[0].mxu0
      %612 = vmatprep.mubr.f32.mxu0 0.0
      %613 = vmatmul.mubr.f32.gmra.mrb[0].mxu0 %v391
      %v614 = vpop.f32.mrb[0].mxu0
      %v615 = vadd.f32 %v295, %v614
      %v616 = vpop.f32.mrb[0].mxu0
      %617 = vdwg.mxu0
      %v618 = vmax.f32 %v460, 0.0
      %v619 = vmax.f32 %v465, 0.0
      %v620 = vmax.f32 %v470, 0.0
      %v621 = vmax.f32 %v475, 0.0
      %v622 = vmax.f32 %v480, 0.0
      %v623 = vmax.f32 %v485, 0.0
      %v624 = vmax.f32 %v490, 0.0
      %v625 = vmax.f32 %v495, 0.0
      %v626 = vmax.f32 %v500, 0.0
      %v627 = vmax.f32 %v505, 0.0
      %v628 = vmax.f32 %v510, 0.0
      %v629 = vmax.f32 %v515, 0.0
      %v630 = vmax.f32 %v520, 0.0
      %v631 = vmax.f32 %v525, 0.0
      %v632 = vmax.f32 %v530, 0.0
      %v633 = vmax.f32 %v535, 0.0
      %v634 = vmax.f32 %v540, 0.0
      %v635 = vmax.f32 %v545, 0.0
      %v636 = vmax.f32 %v550, 0.0
      %v637 = vmax.f32 %v555, 0.0
      %v638 = vmax.f32 %v560, 0.0
      %v639 = vmax.f32 %v565, 0.0
      %v640 = vmax.f32 %v570, 0.0
      %v641 = vmax.f32 %v575, 0.0
      %v642 = vmax.f32 %v580, 0.0
      %v643 = vmax.f32 %v585, 0.0
      %v644 = vmax.f32 %v590, 0.0
      %v645 = vmax.f32 %v595, 0.0
      %v646 = vmax.f32 %v600, 0.0
      %v647 = vmax.f32 %v605, 0.0
      %v648 = vmax.f32 %v610, 0.0
      %v649 = vmax.f32 %v615, 0.0
      %v650 = vld [vmem:[%s2] sm:$0xff]
      %v651 = vld [vmem:[%s2 + $0x8] sm:$0xff]
      %v652 = vld [vmem:[%s2 + $0x10] sm:$0xff]
      %v653 = vld [vmem:[%s2 + $0x18] sm:$0xff]
      %v654 = vld [vmem:[%s2 + $0x20] sm:$0xff]
      %v655 = vld [vmem:[%s2 + $0x28] sm:$0xff]
      %v656 = vld [vmem:[%s2 + $0x30] sm:$0xff]
      %v657 = vld [vmem:[%s2 + $0x38] sm:$0xff]
      %v658 = vld [vmem:[%s2 + $0x40] sm:$0xff]
      %v659 = vld [vmem:[%s2 + $0x48] sm:$0xff]
      %v660 = vld [vmem:[%s2 + $0x50] sm:$0xff]
      %v661 = vld [vmem:[%s2 + $0x58] sm:$0xff]
      %v662 = vld [vmem:[%s2 + $0x60] sm:$0xff]
      %v663 = vld [vmem:[%s2 + $0x68] sm:$0xff]
      %v664 = vld [vmem:[%s2 + $0x70] sm:$0xff]
      %v665 = vld [vmem:[%s2 + $0x78] sm:$0xff]
      %v666 = vlaneseq
      %v667 = vshrl.u32 %v666, 7
      %v668 = vsub.s32 1, %v667
      %v669 = vrot.slane %v287, %v668
      %670 = vmatprep.subr.mxu0 0.0
      %671 = vmatpush1.msra.mxu0 %v650
      %672 = vmatprep.subr.mxu0 0.0
      %673 = vmatpush1.msra.mxu0 %v651
      %674 = vmatprep.subr.mxu0 0.0
      %675 = vmatpush1.msra.mxu0 %v652
      %676 = vmatprep.subr.mxu0 0.0
      %677 = vmatpush1.msra.mxu0 %v653
      %678 = vmatprep.subr.mxu0 0.0
      %679 = vmatpush1.msra.mxu0 %v654
      %680 = vmatprep.subr.mxu0 0.0
      %681 = vmatpush1.msra.mxu0 %v655
      %682 = vmatprep.subr.mxu0 0.0
      %683 = vmatpush1.msra.mxu0 %v656
      %684 = vmatprep.subr.mxu0 0.0
      %685 = vmatpush1.msra.mxu0 %v657
      %686 = vmatprep.subr.mxu0 0.0
      %687 = vmatpush1.msra.mxu0 %v658
      %688 = vmatprep.subr.mxu0 0.0
      %689 = vmatpush1.msra.mxu0 %v659
      %690 = vmatprep.subr.mxu0 0.0
      %691 = vmatpush1.msra.mxu0 %v660
      %692 = vmatprep.subr.mxu0 0.0
      %693 = vmatpush1.msra.mxu0 %v661
      %694 = vmatprep.subr.mxu0 0.0
      %695 = vmatpush1.msra.mxu0 %v662
      %696 = vmatprep.subr.mxu0 0.0
      %697 = vmatpush1.msra.mxu0 %v663
      %698 = vmatprep.subr.mxu0 0.0
      %699 = vmatpush1.msra.mxu0 %v664
      %700 = vmatprep.subr.mxu0 0.0
      %701 = vmatpush1.msra.mxu0 %v665
      %702 = vmatprep.subr.mxu0 0.0
      %703 = vmatpush1.msra.mxu0 0.0
      %704 = vmatprep.subr.mxu0 0.0
      %705 = vmatpush1.msra.mxu0 0.0
      %706 = vmatprep.subr.mxu0 0.0
      %707 = vmatpush1.msra.mxu0 0.0
      %708 = vmatprep.subr.mxu0 0.0
      %709 = vmatpush1.msra.mxu0 0.0
      %710 = vmatprep.subr.mxu0 0.0
      %711 = vmatpush1.msra.mxu0 0.0
      %712 = vmatprep.subr.mxu0 0.0
      %713 = vmatpush1.msra.mxu0 0.0
      %714 = vmatprep.subr.mxu0 0.0
      %715 = vmatpush1.msra.mxu0 0.0
      %716 = vmatprep.subr.mxu0 0.0
      %717 = vmatpush1.msra.mxu0 0.0
      %718 = vmatprep.subr.mxu0 0.0
      %719 = vmatpush1.msra.mxu0 0.0
      %720 = vmatprep.subr.mxu0 0.0
      %721 = vmatpush1.msra.mxu0 0.0
      %722 = vmatprep.subr.mxu0 0.0
      %723 = vmatpush1.msra.mxu0 0.0
      %724 = vmatprep.subr.mxu0 0.0
      %725 = vmatpush1.msra.mxu0 0.0
      %726 = vmatprep.subr.mxu0 0.0
      %727 = vmatpush1.msra.mxu0 0.0
      %728 = vmatprep.subr.mxu0 0.0
      %729 = vmatpush1.msra.mxu0 0.0
      %730 = vmatprep.subr.mxu0 0.0
      %731 = vmatpush1.msra.mxu0 0.0
      %732 = vmatprep.subr.mxu0 0.0
      %733 = vmatpush1.msra.mxu0 0.0
      %734 = vmatprep.mubr.f32.mxu0 0.0
      %735 = vmatmul.mubr.f32.gmra.mrb[0].mxu0 %v618
      %v736 = vpop.f32.mrb[0].mxu0
      %v737 = vadd.f32 %v669, %v736
      %v738 = vpop.f32.mrb[0].mxu0
      %739 = vmatprep.mubr.f32.mxu0 0.0
      %740 = vmatmul.mubr.f32.gmra.mrb[0].mxu0 %v619
      %v741 = vpop.f32.mrb[0].mxu0
      %v742 = vadd.f32 %v669, %v741
      %v743 = vpop.f32.mrb[0].mxu0
      %744 = vmatprep.mubr.f32.mxu0 0.0
      %745 = vmatmul.mubr.f32.gmra.mrb[0].mxu0 %v620
      %v746 = vpop.f32.mrb[0].mxu0
      %v747 = vadd.f32 %v669, %v746
      %v748 = vpop.f32.mrb[0].mxu0
      %749 = vmatprep.mubr.f32.mxu0 0.0
      %750 = vmatmul.mubr.f32.gmra.mrb[0].mxu0 %v621
      %v751 = vpop.f32.mrb[0].mxu0
      %v752 = vadd.f32 %v669, %v751
      %v753 = vpop.f32.mrb[0].mxu0
      %754 = vmatprep.mubr.f32.mxu0 0.0
      %755 = vmatmul.mubr.f32.gmra.mrb[0].mxu0 %v622
      %v756 = vpop.f32.mrb[0].mxu0
      %v757 = vadd.f32 %v669, %v756
      %v758 = vpop.f32.mrb[0].mxu0
      %759 = vmatprep.mubr.f32.mxu0 0.0
      %760 = vmatmul.mubr.f32.gmra.mrb[0].mxu0 %v623
      %v761 = vpop.f32.mrb[0].mxu0
      %v762 = vadd.f32 %v669, %v761
      %v763 = vpop.f32.mrb[0].mxu0
      %764 = vmatprep.mubr.f32.mxu0 0.0
      %765 = vmatmul.mubr.f32.gmra.mrb[0].mxu0 %v624
      %v766 = vpop.f32.mrb[0].mxu0
      %v767 = vadd.f32 %v669, %v766
      %v768 = vpop.f32.mrb[0].mxu0
      %769 = vmatprep.mubr.f32.mxu0 0.0
      %770 = vmatmul.mubr.f32.gmra.mrb[0].mxu0 %v625
      %v771 = vpop.f32.mrb[0].mxu0
      %v772 = vadd.f32 %v669, %v771
      %v773 = vpop.f32.mrb[0].mxu0
      %774 = vmatprep.mubr.f32.mxu0 0.0
      %775 = vmatmul.mubr.f32.gmra.mrb[0].mxu0 %v626
      %v776 = vpop.f32.mrb[0].mxu0
      %v777 = vadd.f32 %v669, %v776
      %v778 = vpop.f32.mrb[0].mxu0
      %779 = vmatprep.mubr.f32.mxu0 0.0
      %780 = vmatmul.mubr.f32.gmra.mrb[0].mxu0 %v627
      %v781 = vpop.f32.mrb[0].mxu0
      %v782 = vadd.f32 %v669, %v781
      %v783 = vpop.f32.mrb[0].mxu0
      %784 = vmatprep.mubr.f32.mxu0 0.0
      %785 = vmatmul.mubr.f32.gmra.mrb[0].mxu0 %v628
      %v786 = vpop.f32.mrb[0].mxu0
      %v787 = vadd.f32 %v669, %v786
      %v788 = vpop.f32.mrb[0].mxu0
      %789 = vmatprep.mubr.f32.mxu0 0.0
      %790 = vmatmul.mubr.f32.gmra.mrb[0].mxu0 %v629
      %v791 = vpop.f32.mrb[0].mxu0
      %v792 = vadd.f32 %v669, %v791
      %v793 = vpop.f32.mrb[0].mxu0
      %794 = vmatprep.mubr.f32.mxu0 0.0
      %795 = vmatmul.mubr.f32.gmra.mrb[0].mxu0 %v630
      %v796 = vpop.f32.mrb[0].mxu0
      %v797 = vadd.f32 %v669, %v796
      %v798 = vpop.f32.mrb[0].mxu0
      %799 = vmatprep.mubr.f32.mxu0 0.0
      %800 = vmatmul.mubr.f32.gmra.mrb[0].mxu0 %v631
      %v801 = vpop.f32.mrb[0].mxu0
      %v802 = vadd.f32 %v669, %v801
      %v803 = vpop.f32.mrb[0].mxu0
      %804 = vmatprep.mubr.f32.mxu0 0.0
      %805 = vmatmul.mubr.f32.gmra.mrb[0].mxu0 %v632
      %v806 = vpop.f32.mrb[0].mxu0
      %v807 = vadd.f32 %v669, %v806
      %v808 = vpop.f32.mrb[0].mxu0
      %809 = vmatprep.mubr.f32.mxu0 0.0
      %810 = vmatmul.mubr.f32.gmra.mrb[0].mxu0 %v633
      %v811 = vpop.f32.mrb[0].mxu0
      %v812 = vadd.f32 %v669, %v811
      %v813 = vpop.f32.mrb[0].mxu0
      %814 = vmatprep.mubr.f32.mxu0 0.0
      %815 = vmatmul.mubr.f32.gmra.mrb[0].mxu0 %v634
      %v816 = vpop.f32.mrb[0].mxu0
      %v817 = vadd.f32 %v669, %v816
      %v818 = vpop.f32.mrb[0].mxu0
      %819 = vmatprep.mubr.f32.mxu0 0.0
      %820 = vmatmul.mubr.f32.gmra.mrb[0].mxu0 %v635
      %v821 = vpop.f32.mrb[0].mxu0
      %v822 = vadd.f32 %v669, %v821
      %v823 = vpop.f32.mrb[0].mxu0
      %824 = vmatprep.mubr.f32.mxu0 0.0
      %825 = vmatmul.mubr.f32.gmra.mrb[0].mxu0 %v636
      %v826 = vpop.f32.mrb[0].mxu0
      %v827 = vadd.f32 %v669, %v826
      %v828 = vpop.f32.mrb[0].mxu0
      %829 = vmatprep.mubr.f32.mxu0 0.0
      %830 = vmatmul.mubr.f32.gmra.mrb[0].mxu0 %v637
      %v831 = vpop.f32.mrb[0].mxu0
      %v832 = vadd.f32 %v669, %v831
      %v833 = vpop.f32.mrb[0].mxu0
      %834 = vmatprep.mubr.f32.mxu0 0.0
      %835 = vmatmul.mubr.f32.gmra.mrb[0].mxu0 %v638
      %v836 = vpop.f32.mrb[0].mxu0
      %v837 = vadd.f32 %v669, %v836
      %v838 = vpop.f32.mrb[0].mxu0
      %839 = vmatprep.mubr.f32.mxu0 0.0
      %840 = vmatmul.mubr.f32.gmra.mrb[0].mxu0 %v639
      %v841 = vpop.f32.mrb[0].mxu0
      %v842 = vadd.f32 %v669, %v841
      %v843 = vpop.f32.mrb[0].mxu0
      %844 = vmatprep.mubr.f32.mxu0 0.0
      %845 = vmatmul.mubr.f32.gmra.mrb[0].mxu0 %v640
      %v846 = vpop.f32.mrb[0].mxu0
      %v847 = vadd.f32 %v669, %v846
      %v848 = vpop.f32.mrb[0].mxu0
      %849 = vmatprep.mubr.f32.mxu0 0.0
      %850 = vmatmul.mubr.f32.gmra.mrb[0].mxu0 %v641
      %v851 = vpop.f32.mrb[0].mxu0
      %v852 = vadd.f32 %v669, %v851
      %v853 = vpop.f32.mrb[0].mxu0
      %854 = vmatprep.mubr.f32.mxu0 0.0
      %855 = vmatmul.mubr.f32.gmra.mrb[0].mxu0 %v642
      %v856 = vpop.f32.mrb[0].mxu0
      %v857 = vadd.f32 %v669, %v856
      %v858 = vpop.f32.mrb[0].mxu0
      %859 = vmatprep.mubr.f32.mxu0 0.0
      %860 = vmatmul.mubr.f32.gmra.mrb[0].mxu0 %v643
      %v861 = vpop.f32.mrb[0].mxu0
      %v862 = vadd.f32 %v669, %v861
      %v863 = vpop.f32.mrb[0].mxu0
      %864 = vmatprep.mubr.f32.mxu0 0.0
      %865 = vmatmul.mubr.f32.gmra.mrb[0].mxu0 %v644
      %v866 = vpop.f32.mrb[0].mxu0
      %v867 = vadd.f32 %v669, %v866
      %v868 = vpop.f32.mrb[0].mxu0
      %869 = vmatprep.mubr.f32.mxu0 0.0
      %870 = vmatmul.mubr.f32.gmra.mrb[0].mxu0 %v645
      %v871 = vpop.f32.mrb[0].mxu0
      %v872 = vadd.f32 %v669, %v871
      %v873 = vpop.f32.mrb[0].mxu0
      %874 = vmatprep.mubr.f32.mxu0 0.0
      %875 = vmatmul.mubr.f32.gmra.mrb[0].mxu0 %v646
      %v876 = vpop.f32.mrb[0].mxu0
      %v877 = vadd.f32 %v669, %v876
      %v878 = vpop.f32.mrb[0].mxu0
      %879 = vmatprep.mubr.f32.mxu0 0.0
      %880 = vmatmul.mubr.f32.gmra.mrb[0].mxu0 %v647
      %v881 = vpop.f32.mrb[0].mxu0
      %v882 = vadd.f32 %v669, %v881
      %v883 = vpop.f32.mrb[0].mxu0
      %884 = vmatprep.mubr.f32.mxu0 0.0
      %885 = vmatmul.mubr.f32.gmra.mrb[0].mxu0 %v648
      %v886 = vpop.f32.mrb[0].mxu0
      %v887 = vadd.f32 %v669, %v886
      %v888 = vpop.f32.mrb[0].mxu0
      %889 = vmatprep.mubr.f32.mxu0 0.0
      %890 = vmatmul.mubr.f32.gmra.mrb[0].mxu0 %v649
      %v891 = vpop.f32.mrb[0].mxu0
      %v892 = vadd.f32 %v669, %v891
      %v893 = vpop.f32.mrb[0].mxu0
      %894 = vdwg.mxu0
      %v895 = vmax.f32 %v737, 0.0
      %v896 = vmax.f32 %v742, 0.0
      %v897 = vmax.f32 %v747, 0.0
      %v898 = vmax.f32 %v752, 0.0
      %v899 = vmax.f32 %v757, 0.0
      %v900 = vmax.f32 %v762, 0.0
      %v901 = vmax.f32 %v767, 0.0
      %v902 = vmax.f32 %v772, 0.0
      %v903 = vmax.f32 %v777, 0.0
      %v904 = vmax.f32 %v782, 0.0
      %v905 = vmax.f32 %v787, 0.0
      %v906 = vmax.f32 %v792, 0.0
      %v907 = vmax.f32 %v797, 0.0
      %v908 = vmax.f32 %v802, 0.0
      %v909 = vmax.f32 %v807, 0.0
      %v910 = vmax.f32 %v812, 0.0
      %v911 = vmax.f32 %v817, 0.0
      %v912 = vmax.f32 %v822, 0.0
      %v913 = vmax.f32 %v827, 0.0
      %v914 = vmax.f32 %v832, 0.0
      %v915 = vmax.f32 %v837, 0.0
      %v916 = vmax.f32 %v842, 0.0
      %v917 = vmax.f32 %v847, 0.0
      %v918 = vmax.f32 %v852, 0.0
      %v919 = vmax.f32 %v857, 0.0
      %v920 = vmax.f32 %v862, 0.0
      %v921 = vmax.f32 %v867, 0.0
      %v922 = vmax.f32 %v872, 0.0
      %v923 = vmax.f32 %v877, 0.0
      %v924 = vmax.f32 %v882, 0.0
      %v925 = vmax.f32 %v887, 0.0
      %v926 = vmax.f32 %v892, 0.0
      %v927 = vld [vmem:[%s3] sm:$0xff]
      %v928 = vld [vmem:[%s3 + $0x8] sm:$0xff]
      %v929 = vld [vmem:[%s3 + $0x10] sm:$0xff]
      %v930 = vld [vmem:[%s3 + $0x18] sm:$0xff]
      %v931 = vld [vmem:[%s3 + $0x20] sm:$0xff]
      %v932 = vld [vmem:[%s3 + $0x28] sm:$0xff]
      %v933 = vld [vmem:[%s3 + $0x30] sm:$0xff]
      %v934 = vld [vmem:[%s3 + $0x38] sm:$0xff]
      %v935 = vld [vmem:[%s3 + $0x40] sm:$0xff]
      %v936 = vld [vmem:[%s3 + $0x48] sm:$0xff]
      %v937 = vld [vmem:[%s3 + $0x50] sm:$0xff]
      %v938 = vld [vmem:[%s3 + $0x58] sm:$0xff]
      %v939 = vld [vmem:[%s3 + $0x60] sm:$0xff]
      %v940 = vld [vmem:[%s3 + $0x68] sm:$0xff]
      %v941 = vld [vmem:[%s3 + $0x70] sm:$0xff]
      %v942 = vld [vmem:[%s3 + $0x78] sm:$0xff]
      %v943 = vld [vmem:[%s5] sm:$0x1]
      %v945 = vlaneseq
      %v946 = vshrl.u32 %v945, 7
      %v947 = vsub.s32 0, %v946
      %v948 = vrot.slane %v943, %v947
      %950 = vmatprep.subr.mxu0 0.0
      %951 = vmatpush1.msra.mxu0 %v927
      %952 = vmatprep.subr.mxu0 0.0
      %953 = vmatpush1.msra.mxu0 %v928
      %954 = vmatprep.subr.mxu0 0.0
      %955 = vmatpush1.msra.mxu0 %v929
      %956 = vmatprep.subr.mxu0 0.0
      %957 = vmatpush1.msra.mxu0 %v930
      %958 = vmatprep.subr.mxu0 0.0
      %959 = vmatpush1.msra.mxu0 %v931
      %960 = vmatprep.subr.mxu0 0.0
      %961 = vmatpush1.msra.mxu0 %v932
      %962 = vmatprep.subr.mxu0 0.0
      %963 = vmatpush1.msra.mxu0 %v933
      %964 = vmatprep.subr.mxu0 0.0
      %965 = vmatpush1.msra.mxu0 %v934
      %966 = vmatprep.subr.mxu0 0.0
      %967 = vmatpush1.msra.mxu0 %v935
      %968 = vmatprep.subr.mxu0 0.0
      %969 = vmatpush1.msra.mxu0 %v936
      %970 = vmatprep.subr.mxu0 0.0
      %971 = vmatpush1.msra.mxu0 %v937
      %972 = vmatprep.subr.mxu0 0.0
      %973 = vmatpush1.msra.mxu0 %v938
      %974 = vmatprep.subr.mxu0 0.0
      %975 = vmatpush1.msra.mxu0 %v939
      %976 = vmatprep.subr.mxu0 0.0
      %977 = vmatpush1.msra.mxu0 %v940
      %978 = vmatprep.subr.mxu0 0.0
      %979 = vmatpush1.msra.mxu0 %v941
      %980 = vmatprep.subr.mxu0 0.0
      %981 = vmatpush1.msra.mxu0 %v942
      %982 = vmatprep.subr.mxu0 0.0
      %983 = vmatpush1.msra.mxu0 0.0
      %984 = vmatprep.subr.mxu0 0.0
      %985 = vmatpush1.msra.mxu0 0.0
      %986 = vmatprep.subr.mxu0 0.0
      %987 = vmatpush1.msra.mxu0 0.0
      %988 = vmatprep.subr.mxu0 0.0
      %989 = vmatpush1.msra.mxu0 0.0
      %990 = vmatprep.subr.mxu0 0.0
      %991 = vmatpush1.msra.mxu0 0.0
      %992 = vmatprep.subr.mxu0 0.0
      %993 = vmatpush1.msra.mxu0 0.0
      %994 = vmatprep.subr.mxu0 0.0
      %995 = vmatpush1.msra.mxu0 0.0
      %996 = vmatprep.subr.mxu0 0.0
      %997 = vmatpush1.msra.mxu0 0.0
      %998 = vmatprep.subr.mxu0 0.0
      %999 = vmatpush1.msra.mxu0 0.0
      %1000 = vmatprep.subr.mxu0 0.0
      %1001 = vmatpush1.msra.mxu0 0.0
      %1002 = vmatprep.subr.mxu0 0.0
      %1003 = vmatpush1.msra.mxu0 0.0
      %1004 = vmatprep.subr.mxu0 0.0
      %1005 = vmatpush1.msra.mxu0 0.0
      %1006 = vmatprep.subr.mxu0 0.0
      %1007 = vmatpush1.msra.mxu0 0.0
      %1008 = vmatprep.subr.mxu0 0.0
      %1009 = vmatpush1.msra.mxu0 0.0
      %1010 = vmatprep.subr.mxu0 0.0
      %1011 = vmatpush1.msra.mxu0 0.0
      %1012 = vmatprep.subr.mxu0 0.0
      %1013 = vmatpush1.msra.mxu0 0.0
      %1014 = vmatprep.mubr.f32.mxu0 0.0
      %1015 = vmatmul.mubr.f32.gmra.mrb[0].mxu0 %v895
      %v1016 = vpop.f32.mrb[0].mxu0
      %v1017 = vadd.f32 %v948, %v1016
      %v1018 = vpop.f32.mrb[0].mxu0
      %1019 = vmatprep.mubr.f32.mxu0 0.0
      %1020 = vmatmul.mubr.f32.gmra.mrb[0].mxu0 %v896
      %v1021 = vpop.f32.mrb[0].mxu0
      %v1022 = vadd.f32 %v948, %v1021
      %v1023 = vpop.f32.mrb[0].mxu0
      %1024 = vmatprep.mubr.f32.mxu0 0.0
      %1025 = vmatmul.mubr.f32.gmra.mrb[0].mxu0 %v897
      %v1026 = vpop.f32.mrb[0].mxu0
      %v1027 = vadd.f32 %v948, %v1026
      %v1028 = vpop.f32.mrb[0].mxu0
      %1029 = vmatprep.mubr.f32.mxu0 0.0
      %1030 = vmatmul.mubr.f32.gmra.mrb[0].mxu0 %v898
      %v1031 = vpop.f32.mrb[0].mxu0
      %v1032 = vadd.f32 %v948, %v1031
      %v1033 = vpop.f32.mrb[0].mxu0
      %1034 = vmatprep.mubr.f32.mxu0 0.0
      %1035 = vmatmul.mubr.f32.gmra.mrb[0].mxu0 %v899
      %v1036 = vpop.f32.mrb[0].mxu0
      %v1037 = vadd.f32 %v948, %v1036
      %v1038 = vpop.f32.mrb[0].mxu0
      %1039 = vmatprep.mubr.f32.mxu0 0.0
      %1040 = vmatmul.mubr.f32.gmra.mrb[0].mxu0 %v900
      %v1041 = vpop.f32.mrb[0].mxu0
      %v1042 = vadd.f32 %v948, %v1041
      %v1043 = vpop.f32.mrb[0].mxu0
      %1044 = vmatprep.mubr.f32.mxu0 0.0
      %1045 = vmatmul.mubr.f32.gmra.mrb[0].mxu0 %v901
      %v1046 = vpop.f32.mrb[0].mxu0
      %v1047 = vadd.f32 %v948, %v1046
      %v1048 = vpop.f32.mrb[0].mxu0
      %1049 = vmatprep.mubr.f32.mxu0 0.0
      %1050 = vmatmul.mubr.f32.gmra.mrb[0].mxu0 %v902
      %v1051 = vpop.f32.mrb[0].mxu0
      %v1052 = vadd.f32 %v948, %v1051
      %v1053 = vpop.f32.mrb[0].mxu0
      %1054 = vmatprep.mubr.f32.mxu0 0.0
      %1055 = vmatmul.mubr.f32.gmra.mrb[0].mxu0 %v903
      %v1056 = vpop.f32.mrb[0].mxu0
      %v1057 = vadd.f32 %v948, %v1056
      %v1058 = vpop.f32.mrb[0].mxu0
      %1059 = vmatprep.mubr.f32.mxu0 0.0
      %1060 = vmatmul.mubr.f32.gmra.mrb[0].mxu0 %v904
      %v1061 = vpop.f32.mrb[0].mxu0
      %v1062 = vadd.f32 %v948, %v1061
      %v1063 = vpop.f32.mrb[0].mxu0
      %1064 = vmatprep.mubr.f32.mxu0 0.0
      %1065 = vmatmul.mubr.f32.gmra.mrb[0].mxu0 %v905
      %v1066 = vpop.f32.mrb[0].mxu0
      %v1067 = vadd.f32 %v948, %v1066
      %v1068 = vpop.f32.mrb[0].mxu0
      %1069 = vmatprep.mubr.f32.mxu0 0.0
      %1070 = vmatmul.mubr.f32.gmra.mrb[0].mxu0 %v906
      %v1071 = vpop.f32.mrb[0].mxu0
      %v1072 = vadd.f32 %v948, %v1071
      %v1073 = vpop.f32.mrb[0].mxu0
      %1074 = vmatprep.mubr.f32.mxu0 0.0
      %1075 = vmatmul.mubr.f32.gmra.mrb[0].mxu0 %v907
      %v1076 = vpop.f32.mrb[0].mxu0
      %v1077 = vadd.f32 %v948, %v1076
      %v1078 = vpop.f32.mrb[0].mxu0
      %1079 = vmatprep.mubr.f32.mxu0 0.0
      %1080 = vmatmul.mubr.f32.gmra.mrb[0].mxu0 %v908
      %v1081 = vpop.f32.mrb[0].mxu0
      %v1082 = vadd.f32 %v948, %v1081
      %v1083 = vpop.f32.mrb[0].mxu0
      %1084 = vmatprep.mubr.f32.mxu0 0.0
      %1085 = vmatmul.mubr.f32.gmra.mrb[0].mxu0 %v909
      %v1086 = vpop.f32.mrb[0].mxu0
      %v1087 = vadd.f32 %v948, %v1086
      %v1088 = vpop.f32.mrb[0].mxu0
      %1089 = vmatprep.mubr.f32.mxu0 0.0
      %1090 = vmatmul.mubr.f32.gmra.mrb[0].mxu0 %v910
      %v1091 = vpop.f32.mrb[0].mxu0
      %v1092 = vadd.f32 %v948, %v1091
      %v1093 = vpop.f32.mrb[0].mxu0
      %1094 = vmatprep.mubr.f32.mxu0 0.0
      %1095 = vmatmul.mubr.f32.gmra.mrb[0].mxu0 %v911
      %v1096 = vpop.f32.mrb[0].mxu0
      %v1097 = vadd.f32 %v948, %v1096
      %v1098 = vpop.f32.mrb[0].mxu0
      %1099 = vmatprep.mubr.f32.mxu0 0.0
      %1100 = vmatmul.mubr.f32.gmra.mrb[0].mxu0 %v912
      %v1101 = vpop.f32.mrb[0].mxu0
      %v1102 = vadd.f32 %v948, %v1101
      %v1103 = vpop.f32.mrb[0].mxu0
      %1104 = vmatprep.mubr.f32.mxu0 0.0
      %1105 = vmatmul.mubr.f32.gmra.mrb[0].mxu0 %v913
      %v1106 = vpop.f32.mrb[0].mxu0
      %v1107 = vadd.f32 %v948, %v1106
      %v1108 = vpop.f32.mrb[0].mxu0
      %1109 = vmatprep.mubr.f32.mxu0 0.0
      %1110 = vmatmul.mubr.f32.gmra.mrb[0].mxu0 %v914
      %v1111 = vpop.f32.mrb[0].mxu0
      %v1112 = vadd.f32 %v948, %v1111
      %v1113 = vpop.f32.mrb[0].mxu0
      %1114 = vmatprep.mubr.f32.mxu0 0.0
      %1115 = vmatmul.mubr.f32.gmra.mrb[0].mxu0 %v915
      %v1116 = vpop.f32.mrb[0].mxu0
      %v1117 = vadd.f32 %v948, %v1116
      %v1118 = vpop.f32.mrb[0].mxu0
      %1119 = vmatprep.mubr.f32.mxu0 0.0
      %1120 = vmatmul.mubr.f32.gmra.mrb[0].mxu0 %v916
      %v1121 = vpop.f32.mrb[0].mxu0
      %v1122 = vadd.f32 %v948, %v1121
      %v1123 = vpop.f32.mrb[0].mxu0
      %1124 = vmatprep.mubr.f32.mxu0 0.0
      %1125 = vmatmul.mubr.f32.gmra.mrb[0].mxu0 %v917
      %v1126 = vpop.f32.mrb[0].mxu0
      %v1127 = vadd.f32 %v948, %v1126
      %v1128 = vpop.f32.mrb[0].mxu0
      %1129 = vmatprep.mubr.f32.mxu0 0.0
      %1130 = vmatmul.mubr.f32.gmra.mrb[0].mxu0 %v918
      %v1131 = vpop.f32.mrb[0].mxu0
      %v1132 = vadd.f32 %v948, %v1131
      %v1133 = vpop.f32.mrb[0].mxu0
      %1134 = vmatprep.mubr.f32.mxu0 0.0
      %1135 = vmatmul.mubr.f32.gmra.mrb[0].mxu0 %v919
      %v1136 = vpop.f32.mrb[0].mxu0
      %v1137 = vadd.f32 %v948, %v1136
      %v1138 = vpop.f32.mrb[0].mxu0
      %1139 = vmatprep.mubr.f32.mxu0 0.0
      %1140 = vmatmul.mubr.f32.gmra.mrb[0].mxu0 %v920
      %v1141 = vpop.f32.mrb[0].mxu0
      %v1142 = vadd.f32 %v948, %v1141
      %v1143 = vpop.f32.mrb[0].mxu0
      %1144 = vmatprep.mubr.f32.mxu0 0.0
      %1145 = vmatmul.mubr.f32.gmra.mrb[0].mxu0 %v921
      %v1146 = vpop.f32.mrb[0].mxu0
      %v1147 = vadd.f32 %v948, %v1146
      %v1148 = vpop.f32.mrb[0].mxu0
      %1149 = vmatprep.mubr.f32.mxu0 0.0
      %1150 = vmatmul.mubr.f32.gmra.mrb[0].mxu0 %v922
      %v1151 = vpop.f32.mrb[0].mxu0
      %v1152 = vadd.f32 %v948, %v1151
      %v1153 = vpop.f32.mrb[0].mxu0
      %1154 = vmatprep.mubr.f32.mxu0 0.0
      %1155 = vmatmul.mubr.f32.gmra.mrb[0].mxu0 %v923
      %v1156 = vpop.f32.mrb[0].mxu0
      %v1157 = vadd.f32 %v948, %v1156
      %v1158 = vpop.f32.mrb[0].mxu0
      %1159 = vmatprep.mubr.f32.mxu0 0.0
      %1160 = vmatmul.mubr.f32.gmra.mrb[0].mxu0 %v924
      %v1161 = vpop.f32.mrb[0].mxu0
      %v1162 = vadd.f32 %v948, %v1161
      %v1163 = vpop.f32.mrb[0].mxu0
      %1164 = vmatprep.mubr.f32.mxu0 0.0
      %1165 = vmatmul.mubr.f32.gmra.mrb[0].mxu0 %v925
      %v1166 = vpop.f32.mrb[0].mxu0
      %v1167 = vadd.f32 %v948, %v1166
      %v1168 = vpop.f32.mrb[0].mxu0
      %1169 = vmatprep.mubr.f32.mxu0 0.0
      %1170 = vmatmul.mubr.f32.gmra.mrb[0].mxu0 %v926
      %v1171 = vpop.f32.mrb[0].mxu0
      %v1172 = vadd.f32 %v948, %v1171
      %v1173 = vpop.f32.mrb[0].mxu0
      %1174 = vdwg.mxu0
      %vm1175 = vcmask 64512
      %v1176 = vsel %vm1175, %v1017, -inf
      %1177 = vmax.xlane.f32.xlu0 %v1176
      %v1178 = vpop.xlane.xlu0 %1177
      %v1179 = vsel %vm1175, %v1022, -inf
      %1180 = vmax.xlane.f32.xlu0 %v1179
      %v1181 = vpop.xlane.xlu0 %1180
      %v1182 = vsel %vm1175, %v1027, -inf
      %1183 = vmax.xlane.f32.xlu0 %v1182
      %v1184 = vpop.xlane.xlu0 %1183
      %v1185 = vsel %vm1175, %v1032, -inf
      %1186 = vmax.xlane.f32.xlu0 %v1185
      %v1187 = vpop.xlane.xlu0 %1186
      %v1188 = vsel %vm1175, %v1037, -inf
      %1189 = vmax.xlane.f32.xlu0 %v1188
      %v1190 = vpop.xlane.xlu0 %1189
      %v1191 = vsel %vm1175, %v1042, -inf
      %1192 = vmax.xlane.f32.xlu0 %v1191
      %v1193 = vpop.xlane.xlu0 %1192
      %v1194 = vsel %vm1175, %v1047, -inf
      %1195 = vmax.xlane.f32.xlu0 %v1194
      %v1196 = vpop.xlane.xlu0 %1195
      %v1197 = vsel %vm1175, %v1052, -inf
      %1198 = vmax.xlane.f32.xlu0 %v1197
      %v1199 = vpop.xlane.xlu0 %1198
      %v1200 = vsel %vm1175, %v1057, -inf
      %1201 = vmax.xlane.f32.xlu0 %v1200
      %v1202 = vpop.xlane.xlu0 %1201
      %v1203 = vsel %vm1175, %v1062, -inf
      %1204 = vmax.xlane.f32.xlu0 %v1203
      %v1205 = vpop.xlane.xlu0 %1204
      %v1206 = vsel %vm1175, %v1067, -inf
      %1207 = vmax.xlane.f32.xlu0 %v1206
      %v1208 = vpop.xlane.xlu0 %1207
      %v1209 = vsel %vm1175, %v1072, -inf
      %1210 = vmax.xlane.f32.xlu0 %v1209
      %v1211 = vpop.xlane.xlu0 %1210
      %v1212 = vsel %vm1175, %v1077, -inf
      %1213 = vmax.xlane.f32.xlu0 %v1212
      %v1214 = vpop.xlane.xlu0 %1213
      %v1215 = vsel %vm1175, %v1082, -inf
      %1216 = vmax.xlane.f32.xlu0 %v1215
      %v1217 = vpop.xlane.xlu0 %1216
      %v1218 = vsel %vm1175, %v1087, -inf
      %1219 = vmax.xlane.f32.xlu0 %v1218
      %v1220 = vpop.xlane.xlu0 %1219
      %v1221 = vsel %vm1175, %v1092, -inf
      %1222 = vmax.xlane.f32.xlu0 %v1221
      %v1223 = vpop.xlane.xlu0 %1222
      %v1224 = vsel %vm1175, %v1097, -inf
      %1225 = vmax.xlane.f32.xlu0 %v1224
      %v1226 = vpop.xlane.xlu0 %1225
      %v1227 = vsel %vm1175, %v1102, -inf
      %1228 = vmax.xlane.f32.xlu0 %v1227
      %v1229 = vpop.xlane.xlu0 %1228
      %v1230 = vsel %vm1175, %v1107, -inf
      %1231 = vmax.xlane.f32.xlu0 %v1230
      %v1232 = vpop.xlane.xlu0 %1231
      %v1233 = vsel %vm1175, %v1112, -inf
      %1234 = vmax.xlane.f32.xlu0 %v1233
      %v1235 = vpop.xlane.xlu0 %1234
      %v1236 = vsel %vm1175, %v1117, -inf
      %1237 = vmax.xlane.f32.xlu0 %v1236
      %v1238 = vpop.xlane.xlu0 %1237
      %v1239 = vsel %vm1175, %v1122, -inf
      %1240 = vmax.xlane.f32.xlu0 %v1239
      %v1241 = vpop.xlane.xlu0 %1240
      %v1242 = vsel %vm1175, %v1127, -inf
      %1243 = vmax.xlane.f32.xlu0 %v1242
      %v1244 = vpop.xlane.xlu0 %1243
      %v1245 = vsel %vm1175, %v1132, -inf
      %1246 = vmax.xlane.f32.xlu0 %v1245
      %v1247 = vpop.xlane.xlu0 %1246
      %v1248 = vsel %vm1175, %v1137, -inf
      %1249 = vmax.xlane.f32.xlu0 %v1248
      %v1250 = vpop.xlane.xlu0 %1249
      %v1251 = vsel %vm1175, %v1142, -inf
      %1252 = vmax.xlane.f32.xlu0 %v1251
      %v1253 = vpop.xlane.xlu0 %1252
      %v1254 = vsel %vm1175, %v1147, -inf
      %1255 = vmax.xlane.f32.xlu0 %v1254
      %v1256 = vpop.xlane.xlu0 %1255
      %v1257 = vsel %vm1175, %v1152, -inf
      %1258 = vmax.xlane.f32.xlu0 %v1257
      %v1259 = vpop.xlane.xlu0 %1258
      %v1260 = vsel %vm1175, %v1157, -inf
      %1261 = vmax.xlane.f32.xlu0 %v1260
      %v1262 = vpop.xlane.xlu0 %1261
      %v1263 = vsel %vm1175, %v1162, -inf
      %1264 = vmax.xlane.f32.xlu0 %v1263
      %v1265 = vpop.xlane.xlu0 %1264
      %v1266 = vsel %vm1175, %v1167, -inf
      %1267 = vmax.xlane.f32.xlu0 %v1266
      %v1268 = vpop.xlane.xlu0 %1267
      %v1269 = vsel %vm1175, %v1172, -inf
      %1270 = vmax.xlane.f32.xlu0 %v1269
      %v1271 = vpop.xlane.xlu0 %1270
      %v1272 = vsub.f32 %v1017, %v1178
      %v1273 = vsub.f32 %v1022, %v1181
      %v1274 = vsub.f32 %v1027, %v1184
      %v1275 = vsub.f32 %v1032, %v1187
      %v1276 = vsub.f32 %v1037, %v1190
      %v1277 = vsub.f32 %v1042, %v1193
      %v1278 = vsub.f32 %v1047, %v1196
      %v1279 = vsub.f32 %v1052, %v1199
      %v1280 = vsub.f32 %v1057, %v1202
      %v1281 = vsub.f32 %v1062, %v1205
      %v1282 = vsub.f32 %v1067, %v1208
      %v1283 = vsub.f32 %v1072, %v1211
      %v1284 = vsub.f32 %v1077, %v1214
      %v1285 = vsub.f32 %v1082, %v1217
      %v1286 = vsub.f32 %v1087, %v1220
      %v1287 = vsub.f32 %v1092, %v1223
      %v1288 = vsub.f32 %v1097, %v1226
      %v1289 = vsub.f32 %v1102, %v1229
      %v1290 = vsub.f32 %v1107, %v1232
      %v1291 = vsub.f32 %v1112, %v1235
      %v1292 = vsub.f32 %v1117, %v1238
      %v1293 = vsub.f32 %v1122, %v1241
      %v1294 = vsub.f32 %v1127, %v1244
      %v1295 = vsub.f32 %v1132, %v1247
      %v1296 = vsub.f32 %v1137, %v1250
      %v1297 = vsub.f32 %v1142, %v1253
      %v1298 = vsub.f32 %v1147, %v1256
      %v1299 = vsub.f32 %v1152, %v1259
      %v1300 = vsub.f32 %v1157, %v1262
      %v1301 = vsub.f32 %v1162, %v1265
      %v1302 = vsub.f32 %v1167, %v1268
      %v1303 = vsub.f32 %v1172, %v1271
      %v1304 = vmul.f32 %v1272, 1.442695
      %v1305 = vpow.pop %v1304
      %v1306 = vmul.f32 %v1273, 1.442695
      %v1307 = vpow.pop %v1306
      %v1308 = vmul.f32 %v1274, 1.442695
      %v1309 = vpow.pop %v1308
      %v1310 = vmul.f32 %v1275, 1.442695
      %v1311 = vpow.pop %v1310
      %v1312 = vmul.f32 %v1276, 1.442695
      %v1313 = vpow.pop %v1312
      %v1314 = vmul.f32 %v1277, 1.442695
      %v1315 = vpow.pop %v1314
      %v1316 = vmul.f32 %v1278, 1.442695
      %v1317 = vpow.pop %v1316
      %v1318 = vmul.f32 %v1279, 1.442695
      %v1319 = vpow.pop %v1318
      %v1320 = vmul.f32 %v1280, 1.442695
      %v1321 = vpow.pop %v1320
      %v1322 = vmul.f32 %v1281, 1.442695
      %v1323 = vpow.pop %v1322
      %v1324 = vmul.f32 %v1282, 1.442695
      %v1325 = vpow.pop %v1324
      %v1326 = vmul.f32 %v1283, 1.442695
      %v1327 = vpow.pop %v1326
      %v1328 = vmul.f32 %v1284, 1.442695
      %v1329 = vpow.pop %v1328
      %v1330 = vmul.f32 %v1285, 1.442695
      %v1331 = vpow.pop %v1330
      %v1332 = vmul.f32 %v1286, 1.442695
      %v1333 = vpow.pop %v1332
      %v1334 = vmul.f32 %v1287, 1.442695
      %v1335 = vpow.pop %v1334
      %v1336 = vmul.f32 %v1288, 1.442695
      %v1337 = vpow.pop %v1336
      %v1338 = vmul.f32 %v1289, 1.442695
      %v1339 = vpow.pop %v1338
      %v1340 = vmul.f32 %v1290, 1.442695
      %v1341 = vpow.pop %v1340
      %v1342 = vmul.f32 %v1291, 1.442695
      %v1343 = vpow.pop %v1342
      %v1344 = vmul.f32 %v1292, 1.442695
      %v1345 = vpow.pop %v1344
      %v1346 = vmul.f32 %v1293, 1.442695
      %v1347 = vpow.pop %v1346
      %v1348 = vmul.f32 %v1294, 1.442695
      %v1349 = vpow.pop %v1348
      %v1350 = vmul.f32 %v1295, 1.442695
      %v1351 = vpow.pop %v1350
      %v1352 = vmul.f32 %v1296, 1.442695
      %v1353 = vpow.pop %v1352
      %v1354 = vmul.f32 %v1297, 1.442695
      %v1355 = vpow.pop %v1354
      %v1356 = vmul.f32 %v1298, 1.442695
      %v1357 = vpow.pop %v1356
      %v1358 = vmul.f32 %v1299, 1.442695
      %v1359 = vpow.pop %v1358
      %v1360 = vmul.f32 %v1300, 1.442695
      %v1361 = vpow.pop %v1360
      %v1362 = vmul.f32 %v1301, 1.442695
      %v1363 = vpow.pop %v1362
      %v1364 = vmul.f32 %v1302, 1.442695
      %v1365 = vpow.pop %v1364
      %v1366 = vmul.f32 %v1303, 1.442695
      %v1367 = vpow.pop %v1366
      %v1368 = vsel %vm1175, %v1305, 0.0
      %1369 = vadd.xlane.f32.xlu0 %v1368
      %v1370 = vpop.xlane.xlu0 %1369
      %v1371 = vsel %vm1175, %v1307, 0.0
      %1372 = vadd.xlane.f32.xlu0 %v1371
      %v1373 = vpop.xlane.xlu0 %1372
      %v1374 = vsel %vm1175, %v1309, 0.0
      %1375 = vadd.xlane.f32.xlu0 %v1374
      %v1376 = vpop.xlane.xlu0 %1375
      %v1377 = vsel %vm1175, %v1311, 0.0
      %1378 = vadd.xlane.f32.xlu0 %v1377
      %v1379 = vpop.xlane.xlu0 %1378
      %v1380 = vsel %vm1175, %v1313, 0.0
      %1381 = vadd.xlane.f32.xlu0 %v1380
      %v1382 = vpop.xlane.xlu0 %1381
      %v1383 = vsel %vm1175, %v1315, 0.0
      %1384 = vadd.xlane.f32.xlu0 %v1383
      %v1385 = vpop.xlane.xlu0 %1384
      %v1386 = vsel %vm1175, %v1317, 0.0
      %1387 = vadd.xlane.f32.xlu0 %v1386
      %v1388 = vpop.xlane.xlu0 %1387
      %v1389 = vsel %vm1175, %v1319, 0.0
      %1390 = vadd.xlane.f32.xlu0 %v1389
      %v1391 = vpop.xlane.xlu0 %1390
      %v1392 = vsel %vm1175, %v1321, 0.0
      %1393 = vadd.xlane.f32.xlu0 %v1392
      %v1394 = vpop.xlane.xlu0 %1393
      %v1395 = vsel %vm1175, %v1323, 0.0
      %1396 = vadd.xlane.f32.xlu0 %v1395
      %v1397 = vpop.xlane.xlu0 %1396
      %v1398 = vsel %vm1175, %v1325, 0.0
      %1399 = vadd.xlane.f32.xlu0 %v1398
      %v1400 = vpop.xlane.xlu0 %1399
      %v1401 = vsel %vm1175, %v1327, 0.0
      %1402 = vadd.xlane.f32.xlu0 %v1401
      %v1403 = vpop.xlane.xlu0 %1402
      %v1404 = vsel %vm1175, %v1329, 0.0
      %1405 = vadd.xlane.f32.xlu0 %v1404
      %v1406 = vpop.xlane.xlu0 %1405
      %v1407 = vsel %vm1175, %v1331, 0.0
      %1408 = vadd.xlane.f32.xlu0 %v1407
      %v1409 = vpop.xlane.xlu0 %1408
      %v1410 = vsel %vm1175, %v1333, 0.0
      %1411 = vadd.xlane.f32.xlu0 %v1410
      %v1412 = vpop.xlane.xlu0 %1411
      %v1413 = vsel %vm1175, %v1335, 0.0
      %1414 = vadd.xlane.f32.xlu0 %v1413
      %v1415 = vpop.xlane.xlu0 %1414
      %v1416 = vsel %vm1175, %v1337, 0.0
      %1417 = vadd.xlane.f32.xlu0 %v1416
      %v1418 = vpop.xlane.xlu0 %1417
      %v1419 = vsel %vm1175, %v1339, 0.0
      %1420 = vadd.xlane.f32.xlu0 %v1419
      %v1421 = vpop.xlane.xlu0 %1420
      %v1422 = vsel %vm1175, %v1341, 0.0
      %1423 = vadd.xlane.f32.xlu0 %v1422
      %v1424 = vpop.xlane.xlu0 %1423
      %v1425 = vsel %vm1175, %v1343, 0.0
      %1426 = vadd.xlane.f32.xlu0 %v1425
      %v1427 = vpop.xlane.xlu0 %1426
      %v1428 = vsel %vm1175, %v1345, 0.0
      %1429 = vadd.xlane.f32.xlu0 %v1428
      %v1430 = vpop.xlane.xlu0 %1429
      %v1431 = vsel %vm1175, %v1347, 0.0
      %1432 = vadd.xlane.f32.xlu0 %v1431
      %v1433 = vpop.xlane.xlu0 %1432
      %v1434 = vsel %vm1175, %v1349, 0.0
      %1435 = vadd.xlane.f32.xlu0 %v1434
      %v1436 = vpop.xlane.xlu0 %1435
      %v1437 = vsel %vm1175, %v1351, 0.0
      %1438 = vadd.xlane.f32.xlu0 %v1437
      %v1439 = vpop.xlane.xlu0 %1438
      %v1440 = vsel %vm1175, %v1353, 0.0
      %1441 = vadd.xlane.f32.xlu0 %v1440
      %v1442 = vpop.xlane.xlu0 %1441
      %v1443 = vsel %vm1175, %v1355, 0.0
      %1444 = vadd.xlane.f32.xlu0 %v1443
      %v1445 = vpop.xlane.xlu0 %1444
      %v1446 = vsel %vm1175, %v1357, 0.0
      %1447 = vadd.xlane.f32.xlu0 %v1446
      %v1448 = vpop.xlane.xlu0 %1447
      %v1449 = vsel %vm1175, %v1359, 0.0
      %1450 = vadd.xlane.f32.xlu0 %v1449
      %v1451 = vpop.xlane.xlu0 %1450
      %v1452 = vsel %vm1175, %v1361, 0.0
      %1453 = vadd.xlane.f32.xlu0 %v1452
      %v1454 = vpop.xlane.xlu0 %1453
      %v1455 = vsel %vm1175, %v1363, 0.0
      %1456 = vadd.xlane.f32.xlu0 %v1455
      %v1457 = vpop.xlane.xlu0 %1456
      %v1458 = vsel %vm1175, %v1365, 0.0
      %1459 = vadd.xlane.f32.xlu0 %v1458
      %v1460 = vpop.xlane.xlu0 %1459
      %v1461 = vsel %vm1175, %v1367, 0.0
      %1462 = vadd.xlane.f32.xlu0 %v1461
      %v1463 = vpop.xlane.xlu0 %1462
      %v1464 = vrcp.pop %v1370
      %v1465 = vmul.f32 %v1305, %v1464
      %v1466 = vrcp.pop %v1373
      %v1467 = vmul.f32 %v1307, %v1466
      %v1468 = vrcp.pop %v1376
      %v1469 = vmul.f32 %v1309, %v1468
      %v1470 = vrcp.pop %v1379
      %v1471 = vmul.f32 %v1311, %v1470
      %v1472 = vrcp.pop %v1382
      %v1473 = vmul.f32 %v1313, %v1472
      %v1474 = vrcp.pop %v1385
      %v1475 = vmul.f32 %v1315, %v1474
      %v1476 = vrcp.pop %v1388
      %v1477 = vmul.f32 %v1317, %v1476
      %v1478 = vrcp.pop %v1391
      %v1479 = vmul.f32 %v1319, %v1478
      %v1480 = vrcp.pop %v1394
      %v1481 = vmul.f32 %v1321, %v1480
      %v1482 = vrcp.pop %v1397
      %v1483 = vmul.f32 %v1323, %v1482
      %v1484 = vrcp.pop %v1400
      %v1485 = vmul.f32 %v1325, %v1484
      %v1486 = vrcp.pop %v1403
      %v1487 = vmul.f32 %v1327, %v1486
      %v1488 = vrcp.pop %v1406
      %v1489 = vmul.f32 %v1329, %v1488
      %v1490 = vrcp.pop %v1409
      %v1491 = vmul.f32 %v1331, %v1490
      %v1492 = vrcp.pop %v1412
      %v1493 = vmul.f32 %v1333, %v1492
      %v1494 = vrcp.pop %v1415
      %v1495 = vmul.f32 %v1335, %v1494
      %v1496 = vrcp.pop %v1418
      %v1497 = vmul.f32 %v1337, %v1496
      %v1498 = vrcp.pop %v1421
      %v1499 = vmul.f32 %v1339, %v1498
      %v1500 = vrcp.pop %v1424
      %v1501 = vmul.f32 %v1341, %v1500
      %v1502 = vrcp.pop %v1427
      %v1503 = vmul.f32 %v1343, %v1502
      %v1504 = vrcp.pop %v1430
      %v1505 = vmul.f32 %v1345, %v1504
      %v1506 = vrcp.pop %v1433
      %v1507 = vmul.f32 %v1347, %v1506
      %v1508 = vrcp.pop %v1436
      %v1509 = vmul.f32 %v1349, %v1508
      %v1510 = vrcp.pop %v1439
      %v1511 = vmul.f32 %v1351, %v1510
      %v1512 = vrcp.pop %v1442
      %v1513 = vmul.f32 %v1353, %v1512
      %v1514 = vrcp.pop %v1445
      %v1515 = vmul.f32 %v1355, %v1514
      %v1516 = vrcp.pop %v1448
      %v1517 = vmul.f32 %v1357, %v1516
      %v1518 = vrcp.pop %v1451
      %v1519 = vmul.f32 %v1359, %v1518
      %v1520 = vrcp.pop %v1454
      %v1521 = vmul.f32 %v1361, %v1520
      %v1522 = vrcp.pop %v1457
      %v1523 = vmul.f32 %v1363, %v1522
      %v1524 = vrcp.pop %v1460
      %v1525 = vmul.f32 %v1365, %v1524
      %v1526 = vrcp.pop %v1463
      %v1527 = vmul.f32 %v1367, %v1526
      %1528 = vst.msk [vmem:[%s253] sm:$0xff] %vm1175, %v1465
      %1529 = vst.msk [vmem:[%s253 + $0x8] sm:$0xff] %vm1175, %v1467
      %1530 = vst.msk [vmem:[%s253 + $0x10] sm:$0xff] %vm1175, %v1469
      %1531 = vst.msk [vmem:[%s253 + $0x18] sm:$0xff] %vm1175, %v1471
      %1532 = vst.msk [vmem:[%s253 + $0x20] sm:$0xff] %vm1175, %v1473
      %1533 = vst.msk [vmem:[%s253 + $0x28] sm:$0xff] %vm1175, %v1475
      %1534 = vst.msk [vmem:[%s253 + $0x30] sm:$0xff] %vm1175, %v1477
      %1535 = vst.msk [vmem:[%s253 + $0x38] sm:$0xff] %vm1175, %v1479
      %1536 = vst.msk [vmem:[%s253 + $0x40] sm:$0xff] %vm1175, %v1481
      %1537 = vst.msk [vmem:[%s253 + $0x48] sm:$0xff] %vm1175, %v1483
      %1538 = vst.msk [vmem:[%s253 + $0x50] sm:$0xff] %vm1175, %v1485
      %1539 = vst.msk [vmem:[%s253 + $0x58] sm:$0xff] %vm1175, %v1487
      %1540 = vst.msk [vmem:[%s253 + $0x60] sm:$0xff] %vm1175, %v1489
      %1541 = vst.msk [vmem:[%s253 + $0x68] sm:$0xff] %vm1175, %v1491
      %1542 = vst.msk [vmem:[%s253 + $0x70] sm:$0xff] %vm1175, %v1493
      %1543 = vst.msk [vmem:[%s253 + $0x78] sm:$0xff] %vm1175, %v1495
      %1544 = vst.msk [vmem:[%s253 + $0x80] sm:$0xff] %vm1175, %v1497
      %1545 = vst.msk [vmem:[%s253 + $0x88] sm:$0xff] %vm1175, %v1499
      %1546 = vst.msk [vmem:[%s253 + $0x90] sm:$0xff] %vm1175, %v1501
      %1547 = vst.msk [vmem:[%s253 + $0x98] sm:$0xff] %vm1175, %v1503
      %1548 = vst.msk [vmem:[%s253 + $0xa0] sm:$0xff] %vm1175, %v1505
      %1549 = vst.msk [vmem:[%s253 + $0xa8] sm:$0xff] %vm1175, %v1507
      %1550 = vst.msk [vmem:[%s253 + $0xb0] sm:$0xff] %vm1175, %v1509
      %1551 = vst.msk [vmem:[%s253 + $0xb8] sm:$0xff] %vm1175, %v1511
      %1552 = vst.msk [vmem:[%s253 + $0xc0] sm:$0xff] %vm1175, %v1513
      %1553 = vst.msk [vmem:[%s253 + $0xc8] sm:$0xff] %vm1175, %v1515
      %1554 = vst.msk [vmem:[%s253 + $0xd0] sm:$0xff] %vm1175, %v1517
      %1555 = vst.msk [vmem:[%s253 + $0xd8] sm:$0xff] %vm1175, %v1519
      %1556 = vst.msk [vmem:[%s253 + $0xe0] sm:$0xff] %vm1175, %v1521
      %1557 = vst.msk [vmem:[%s253 + $0xe8] sm:$0xff] %vm1175, %v1523
      %1558 = vst.msk [vmem:[%s253 + $0xf0] sm:$0xff] %vm1175, %v1525
      %1559 = vst.msk [vmem:[%s253 + $0xf8] sm:$0xff] %vm1175, %v1527
      %s1560 = smul.u32 32, %s17
      %p1561 = scmp.lt.s32.totalorder %s1560, 63
      %s1562 = scalar_select %p1561, %s1560, 63
      %s1563 = smul.addr %s1562, 8
      %s1564 = scalar_lea.vmem %s6, %s1563
      // Predicated region
      $region45: #{tpu_custom_call.1} parent=43 // pred_check
        %p1565 = pneg %p166
      $region46: #{tpu_custom_call.1} parent=43 // pred_check_branch
        %1567 = sbr.rel (%p1565) target = $region48
      $region47: #{tpu_custom_call.1} parent=43 // pred_region
        %s1568 = smul.u32 32, %s17
      $region48: #{tpu_custom_call.1} parent=43 // pred_fallthru
        _
    $region44: #{tpu_custom_call.1} parent=5 // pred_fallthru
      _
    %p1569 = scmp.le.s32.totalorder 2, %s12
    // Predicated region
    $region49: #{tpu_custom_call.1} parent=5 // pred_check
      %p1570 = pneg %p1569
    $region50: #{tpu_custom_call.1} parent=5 // pred_check_branch
      %1572 = sbr.rel (%p1570) target = $region52
    $region51: #{tpu_custom_call.1} parent=5 // pred_region
      %s1573 = ssub.s32 %s12, 2
      // Predicated region
      $region53: #{tpu_custom_call.1} parent=51 // pred_check
        %p1574 = pneg %p172
      $region54: #{tpu_custom_call.1} parent=51 // pred_check_branch
        %1576 = sbr.rel (%p1574) target = $region56
      $region55: #{tpu_custom_call.1} parent=51 // pred_region
        %s1577 = smul.u32 32, %s18
        %p1578 = scmp.lt.s32.totalorder %s1577, 63
        %s1579 = scalar_select %p1578, %s1577, 63
        %s1580 = smul.addr %s1579, 8
        %s1581 = scalar_lea.vmem %s6, %s1580
      $region56: #{tpu_custom_call.1} parent=51 // pred_fallthru
        _
    $region52: #{tpu_custom_call.1} parent=5 // pred_fallthru
      _
  $region6: #{tpu_custom_call.1} parent=0 // loop_footer
    %s16 = sadd.s32 1, %s12
  $region7: #{tpu_custom_call.1} parent=0 // loop_footer_branch
    %11 = sbr.rel target = $region3
  $region8: #{tpu_custom_call.1} parent=0 // loop_exit
    _

</llo_original>
